<compile_context>
chip_gen: v5e
topology: v5e:2x2
jax: 0.10.0
libtpu: 0.0.40
codegen_flags: <defaults>
</compile_context>

<pallas_src>
from functools import partial

import numpy as np
import jax
import jax.numpy as jnp
from jax.experimental import pallas as pl
from jax.experimental.pallas import tpu as pltpu

K = 5


def roi_conv3d_kernel(bd_ref, khw_ref, x_ref, o_ref, y_ref):
    # bd_ref : VMEM f32[Nb*D, Nb*D]  block-diag kron(I_Nb, B_D)   (resident)
    # khw_ref: VMEM f32[H*W, H*W]    kron(B_H, B_W)               (resident)
    # x_ref  : VMEM f32[Nb, D, H*W]  Nb input volumes, lane-dense last dim
    # o_ref  : VMEM     [Nb, D, H*W]
    # y_ref  : VMEM f32[Nb*D, H*W]   scratch holding the D-pass result
    nb, d, hw = x_ref.shape
    m = nb * d

    # D-axis box sum: one full-depth block-diagonal MXU matmul over the slab.
    y_ref[...] = jnp.dot(
        bd_ref[...],
        x_ref[...].reshape(m, hw),
        preferred_element_type=jnp.float32,
    )

    # Fused H/W box sum: one lane-dense right-matmul, single reshaped store.
    o_ref[...] = (
        jnp.dot(y_ref[...], khw_ref[...], preferred_element_type=jnp.float32)
        .reshape(nb, d, hw)
        .astype(o_ref.dtype)
    )


def _band(n, pad):
    # Symmetric banded all-ones matrix: B[i, j] = 1 iff |i - j| <= pad.
    i = np.arange(n)
    return (np.abs(i[:, None] - i[None, :]) <= pad).astype(np.float32)


@partial(jax.jit, static_argnums=1)
def _roi_conv3d_box(x, kernel_size):
    N, C, D, H, W = x.shape
    assert C == 1, "ROIConv3d expects a single input channel"
    pad = kernel_size // 2
    HW = H * W

    # ---- per-step batch fold -------------------------------------------------
    target_rows = 256                          # fill the 256-deep MXU (v6e/v7x)
    nb_target = min(64, max(1, target_rows // D))
    if N >= 2 * nb_target:
        Nb = nb_target                         # big fold: 256+ LHS rows per pass
    elif N >= 2:
        Nb = max(1, N // 2)                    # keep >= 2 grid steps (v7x megacore)
    else:
        Nb = 1
    num_steps = -(-N // Nb)                    # cdiv
    N_pad = num_steps * Nb                     # pad N up; padded rows are zeros
    M = Nb * D

    # ---- separable banded operators (trace-time constants, built per compile)
    bd_blk = np.kron(np.eye(Nb, dtype=np.float32), _band(D, pad))   # (M, M)
    k_hw = np.kron(_band(H, pad), _band(W, pad))                    # (HW, HW)

    # Scalability guard: K_HW is O((H*W)^2) f32 and must stay VMEM-resident.
    assert HW * HW * 4 <= 8 * 1024 * 1024, "H*W too large for resident K_HW"
    # TODO(synk): tile K_HW over a second grid axis (or use separate banded H
    # and W passes) when (H*W)^2 * 4 bytes no longer fits comfortably in VMEM.

    x2d = x[:, 0].reshape(N, D, HW).astype(jnp.float32)
    if N_pad != N:
        x2d = jnp.pad(x2d, ((0, N_pad - N), (0, 0), (0, 0)))

    flops = num_steps * (2 * M * M * HW + 2 * M * HW * HW)
    bytes_accessed = (2 * N_pad * D * HW + M * M + HW * HW) * 4

    out2d = pl.pallas_call(
        roi_conv3d_kernel,
        out_shape=jax.ShapeDtypeStruct((N_pad, D, HW), x.dtype),
        grid_spec=pltpu.PrefetchScalarGridSpec(
            num_scalar_prefetch=0,
            grid=(num_steps,),
            in_specs=[
                # Operator matrices: constant block index -> resident, DMA'd
                # once per core.
                pl.BlockSpec((M, M), lambda n: (0, 0)),
                pl.BlockSpec((HW, HW), lambda n: (0, 0)),
                # Nb volumes per step; last dim H*W is lane-dense.
                pl.BlockSpec((Nb, D, HW), lambda n: (n, 0, 0)),
            ],
            out_specs=pl.BlockSpec((Nb, D, HW), lambda n: (n, 0, 0)),
            scratch_shapes=[pltpu.VMEM((M, HW), jnp.float32)],
        ),
        compiler_params=pltpu.CompilerParams(
            # Batch axis is fully independent -> shardable across v7x's 2 TCs.
            dimension_semantics=("parallel",),
        ),
        cost_estimate=pl.CostEstimate(
            flops=flops, transcendentals=0, bytes_accessed=bytes_accessed
        ),
    )(jnp.asarray(bd_blk), jnp.asarray(k_hw), x2d)

    # (N_pad, D, H*W) -> (N, 1, D, H, W), dropping the padded volumes.
    return out2d[:N].reshape(N, D, H, W)[:, None]


def roi_conv3d(x, weight):
    """x: (N, 1, D, H, W); weight: (1, 1, K, K, K) fixed all-ones box kernel."""
    w = np.asarray(jax.device_get(weight))
    assert w.ndim == 5 and w.shape[0] == 1 and w.shape[1] == 1 and np.all(
        w == 1.0
    ), "ROIConv3d weight must be the fixed all-ones box kernel"
    return _roi_conv3d_box(x, int(w.shape[-1]))


def roi_conv3d_reference(x, weight):
    # Pure-JAX reference (XLA conv) for correctness checking.
    pad = weight.shape[-1] // 2
    return jax.lax.conv_general_dilated(
        x.astype(jnp.float32),
        weight.astype(jnp.float32),
        window_strides=(1, 1, 1),
        padding=[(pad, pad)] * 3,
        dimension_numbers=("NCDHW", "OIDHW", "NCDHW"),
    )


if __name__ == "__main__":
    key = jax.random.PRNGKey(0)
    N, D, H, W = 2, 16, 16, 16
    x = jax.random.normal(key, (N, 1, D, H, W), dtype=jnp.float32)
    # Deterministic parameter init per module __init__: all-ones 5^3 kernel.
    weight = jnp.ones((1, 1, K, K, K), dtype=jnp.float32)

    out = jax.block_until_ready(roi_conv3d(x, weight))
    ref = jax.block_until_ready(roi_conv3d_reference(x, weight))

    assert out.shape == (N, 1, D, H, W)
    assert jnp.allclose(out, ref, atol=1e-3, rtol=1e-4), float(
        jnp.max(jnp.abs(out - ref))
    )

    print("KERNEL_OK")
</pallas_src>

<mosaic_0001>
module attributes {stable_mosaic.version = 11 : i64} {
  func.func @roi_conv3d_kernel(%arg0: i32, %arg1: memref<16x16xf32, #tpu.memory_space<vmem>>, %arg2: memref<256x256xf32, #tpu.memory_space<vmem>>, %arg3: memref<1x16x256xf32, #tpu.memory_space<vmem>>, %arg4: memref<1x16x256xf32, #tpu.memory_space<vmem>>, %arg5: memref<16x256xf32, #tpu.memory_space<vmem>>) attributes {dimension_semantics = [#tpu.dimension_semantics<parallel>], iteration_bounds = array<i64: 2>, scalar_prefetch = 0 : i64, scratch_operands = 1 : i64, tpu.core_type = #tpu.core_type<tc>, window_params = [{pipeline_mode = #tpu.pipeline_mode<synchronous>, transform_indices = @transform_0, window_bounds = array<i64: 16, 16>}, {pipeline_mode = #tpu.pipeline_mode<synchronous>, transform_indices = @transform_1, window_bounds = array<i64: 256, 256>}, {transform_indices = @transform_2, window_bounds = array<i64: 1, 16, 256>}, {transform_indices = @transform_3, window_bounds = array<i64: 1, 16, 256>}]} {
    %c0 = arith.constant 0 : index
    %c0_0 = arith.constant 0 : index
    %0 = vector.load %arg1[%c0, %c0_0] : memref<16x16xf32, #tpu.memory_space<vmem>>, vector<16x16xf32>
    %c0_1 = arith.constant 0 : index
    %c0_2 = arith.constant 0 : index
    %c0_3 = arith.constant 0 : index
    %1 = vector.load %arg3[%c0_1, %c0_2, %c0_3] : memref<1x16x256xf32, #tpu.memory_space<vmem>>, vector<1x16x256xf32>
    %2 = vector.shape_cast %1 : vector<1x16x256xf32> to vector<16x256xf32>
    %cst = arith.constant dense<0.000000e+00> : vector<16x256xf32>
    %3 = tpu.matmul %0, %2, %cst {dimension_numbers = #tpu.dot_dimension_numbers<[1], [0], [0], [1], [0, 0, 1, 1], [], []>} : vector<16x16xf32>, vector<16x256xf32>, vector<16x256xf32> -> vector<16x256xf32>
    %c0_4 = arith.constant 0 : index
    %c0_5 = arith.constant 0 : index
    %4 = vector.load %arg5[%c0_4, %c0_5] : memref<16x256xf32, #tpu.memory_space<vmem>>, vector<16x256xf32>
    tpu.vector_store %arg5[%c0_4, %c0_5], %3 {strides = array<i32>} : memref<16x256xf32, #tpu.memory_space<vmem>>, vector<16x256xf32>,
    %c0_6 = arith.constant 0 : index
    %c0_7 = arith.constant 0 : index
    %5 = vector.load %arg5[%c0_6, %c0_7] : memref<16x256xf32, #tpu.memory_space<vmem>>, vector<16x256xf32>
    %c0_8 = arith.constant 0 : index
    %c0_9 = arith.constant 0 : index
    %6 = vector.load %arg2[%c0_8, %c0_9] : memref<256x256xf32, #tpu.memory_space<vmem>>, vector<256x256xf32>
    %cst_10 = arith.constant dense<0.000000e+00> : vector<16x256xf32>
    %7 = tpu.matmul %5, %6, %cst_10 {dimension_numbers = #tpu.dot_dimension_numbers<[1], [0], [0], [1], [0, 0, 1, 1], [], []>} : vector<16x256xf32>, vector<256x256xf32>, vector<16x256xf32> -> vector<16x256xf32>
    %8 = vector.shape_cast %7 : vector<16x256xf32> to vector<1x16x256xf32>
    %c0_11 = arith.constant 0 : index
    %c0_12 = arith.constant 0 : index
    %c0_13 = arith.constant 0 : index
    %9 = vector.load %arg4[%c0_11, %c0_12, %c0_13] : memref<1x16x256xf32, #tpu.memory_space<vmem>>, vector<1x16x256xf32>
    tpu.vector_store %arg4[%c0_11, %c0_12, %c0_13], %8 {strides = array<i32>} : memref<1x16x256xf32, #tpu.memory_space<vmem>>, vector<1x16x256xf32>,
    return
  }
  func.func @transform_0(%arg0: i32) -> (i32, i32) {
    %c0_i32 = arith.constant 0 : i32
    %c0_i32_0 = arith.constant 0 : i32
    %c0_i32_1 = arith.constant 0 : i32
    return %c0_i32, %c0_i32_0 : i32, i32
  }
  func.func @transform_1(%arg0: i32) -> (i32, i32) {
    %c0_i32 = arith.constant 0 : i32
    %c0_i32_0 = arith.constant 0 : i32
    %c0_i32_1 = arith.constant 0 : i32
    return %c0_i32, %c0_i32_0 : i32, i32
  }
  func.func @transform_2(%arg0: i32) -> (i32, i32, i32) {
    %c0_i32 = arith.constant 0 : i32
    %c0_i32_0 = arith.constant 0 : i32
    %c0_i32_1 = arith.constant 0 : i32
    return %arg0, %c0_i32, %c0_i32_0 : i32, i32, i32
  }
  func.func @transform_3(%arg0: i32) -> (i32, i32, i32) {
    %c0_i32 = arith.constant 0 : i32
    %c0_i32_0 = arith.constant 0 : i32
    %c0_i32_1 = arith.constant 0 : i32
    return %arg0, %c0_i32, %c0_i32_0 : i32, i32, i32
  }
}

</mosaic_0001>

<llo_original>
// kernel: squeeze.1
$region0: #{squeeze.1}
  %s0 = inlined_call_operand.hbm [shape: f32[2,1,16,16,16], index: 0, kind: input, shape index: {}]
  %s1 = inlined_call_operand.vmem [shape: f32[2,16,256], index: 1, kind: output, shape index: {}]
  $region1: #{squeeze.1} parent=0
    #allocation0 [shape = 'u8[262144]{0}', space=vmem, size = 0x40000, scoped, tag = 'operand span for operand 0']
    #allocation1 [shape = 's32[1]{0}', space=sflag, size = 0x4, scoped, tag = 'scoped memory for squeeze.1']
    %2 = vsyncpa [#allocation1], 0
    %4 = vsyncadd [#allocation1], 0
    %s6 = sshll.u32 %s0, 4
    %s7 = int_to_ptr.hbm [resolvable:$true] %s6
    %s8 = sshll.u32 [#allocation0], 4
    %s9 = int_to_ptr.vmem [resolvable:$true] %s8
    %11 = dma.hbm_to_vmem [thread:$0]  %s7, 8192, %s9, [#allocation1]
    %13 = dma.done [#allocation1], 8192
    %v14 = vld [vmem:[#allocation0] ss:$8 sm:$0xf]
    %v15 = vld [vmem:[#allocation0] ss:$8 sm:$0xf0]
    %vm16 = vcmask 1047556
    %v17 = vsel %vm16, %v15, %v14
    %vm18 = vcmask 130048
    %19 = vst.msk [vmem:[%s1] ss:$8 sm:$0x3] %vm18, %v17
    %s20 = scalar_lea.vmem %s1, 4294967281
    %21 = vst.msk [vmem:[%s20] ss:$8 sm:$0xc] %vm18, %v17
    %s22 = scalar_lea.vmem %s1, 4294967266
    %23 = vst.msk [vmem:[%s22] ss:$8 sm:$0x30] %vm18, %v17
    %s24 = scalar_lea.vmem %s1, 4294967251
    %25 = vst.msk [vmem:[%s24] ss:$8 sm:$0xc0] %vm18, %v17
    %s26 = scalar_lea.vmem [#allocation0], 64
    %v27 = vld [vmem:[%s26] ss:$8 sm:$0xf]
    %s28 = scalar_lea.vmem [#allocation0], 64
    %v29 = vld [vmem:[%s28] ss:$8 sm:$0xf0]
    %vm30 = vcmask 1047556
    %v31 = vsel %vm30, %v29, %v27
    %vm32 = vcmask 130048
    %s33 = scalar_lea.vmem %s1, 4
    %34 = vst.msk [vmem:[%s33] ss:$8 sm:$0x3] %vm32, %v31
    %s35 = scalar_lea.vmem %s1, 4294967285
    %36 = vst.msk [vmem:[%s35] ss:$8 sm:$0xc] %vm32, %v31
    %s37 = scalar_lea.vmem %s1, 4294967270
    %38 = vst.msk [vmem:[%s37] ss:$8 sm:$0x30] %vm32, %v31
    %s39 = scalar_lea.vmem %s1, 4294967255
    %40 = vst.msk [vmem:[%s39] ss:$8 sm:$0xc0] %vm32, %v31
    %s41 = scalar_lea.vmem [#allocation0], 128
    %v42 = vld [vmem:[%s41] ss:$8 sm:$0xf]
    %s43 = scalar_lea.vmem [#allocation0], 128
    %v44 = vld [vmem:[%s43] ss:$8 sm:$0xf0]
    %vm45 = vcmask 1047556
    %v46 = vsel %vm45, %v44, %v42
    %vm47 = vcmask 130048
    %s48 = scalar_lea.vmem %s1, 16
    %49 = vst.msk [vmem:[%s48] ss:$8 sm:$0x3] %vm47, %v46
    %s50 = scalar_lea.vmem %s1, 1
    %51 = vst.msk [vmem:[%s50] ss:$8 sm:$0xc] %vm47, %v46
    %s52 = scalar_lea.vmem %s1, 4294967282
    %53 = vst.msk [vmem:[%s52] ss:$8 sm:$0x30] %vm47, %v46
    %s54 = scalar_lea.vmem %s1, 4294967267
    %55 = vst.msk [vmem:[%s54] ss:$8 sm:$0xc0] %vm47, %v46
    %s56 = scalar_lea.vmem [#allocation0], 192
    %v57 = vld [vmem:[%s56] ss:$8 sm:$0xf]
    %s58 = scalar_lea.vmem [#allocation0], 192
    %v59 = vld [vmem:[%s58] ss:$8 sm:$0xf0]
    %vm60 = vcmask 1047556
    %v61 = vsel %vm60, %v59, %v57
    %vm62 = vcmask 130048
    %s63 = scalar_lea.vmem %s1, 20
    %64 = vst.msk [vmem:[%s63] ss:$8 sm:$0x3] %vm62, %v61
    %s65 = scalar_lea.vmem %s1, 5
    %66 = vst.msk [vmem:[%s65] ss:$8 sm:$0xc] %vm62, %v61
    %s67 = scalar_lea.vmem %s1, 4294967286
    %68 = vst.msk [vmem:[%s67] ss:$8 sm:$0x30] %vm62, %v61
    %s69 = scalar_lea.vmem %s1, 4294967271
    %70 = vst.msk [vmem:[%s69] ss:$8 sm:$0xc0] %vm62, %v61
    %s71 = scalar_lea.vmem [#allocation0], 256
    %v72 = vld [vmem:[%s71] ss:$8 sm:$0xf]
    %s73 = scalar_lea.vmem [#allocation0], 256
    %v74 = vld [vmem:[%s73] ss:$8 sm:$0xf0]
    %vm75 = vcmask 1047556
    %v76 = vsel %vm75, %v74, %v72
    %vm77 = vcmask 130048
    %s78 = scalar_lea.vmem %s1, 32
    %79 = vst.msk [vmem:[%s78] ss:$8 sm:$0x3] %vm77, %v76
    %s80 = scalar_lea.vmem %s1, 17
    %81 = vst.msk [vmem:[%s80] ss:$8 sm:$0xc] %vm77, %v76
    %s82 = scalar_lea.vmem %s1, 2
    %83 = vst.msk [vmem:[%s82] ss:$8 sm:$0x30] %vm77, %v76
    %s84 = scalar_lea.vmem %s1, 4294967283
    %85 = vst.msk [vmem:[%s84] ss:$8 sm:$0xc0] %vm77, %v76
    %s86 = scalar_lea.vmem [#allocation0], 320
    %v87 = vld [vmem:[%s86] ss:$8 sm:$0xf]
    %s88 = scalar_lea.vmem [#allocation0], 320
    %v89 = vld [vmem:[%s88] ss:$8 sm:$0xf0]
    %vm90 = vcmask 1047556
    %v91 = vsel %vm90, %v89, %v87
    %vm92 = vcmask 130048
    %s93 = scalar_lea.vmem %s1, 36
    %94 = vst.msk [vmem:[%s93] ss:$8 sm:$0x3] %vm92, %v91
    %s95 = scalar_lea.vmem %s1, 21
    %96 = vst.msk [vmem:[%s95] ss:$8 sm:$0xc] %vm92, %v91
    %s97 = scalar_lea.vmem %s1, 6
    %98 = vst.msk [vmem:[%s97] ss:$8 sm:$0x30] %vm92, %v91
    %s99 = scalar_lea.vmem %s1, 4294967287
    %100 = vst.msk [vmem:[%s99] ss:$8 sm:$0xc0] %vm92, %v91
    %s101 = scalar_lea.vmem [#allocation0], 384
    %v102 = vld [vmem:[%s101] ss:$8 sm:$0xf]
    %s103 = scalar_lea.vmem [#allocation0], 384
    %v104 = vld [vmem:[%s103] ss:$8 sm:$0xf0]
    %vm105 = vcmask 1047556
    %v106 = vsel %vm105, %v104, %v102
    %vm107 = vcmask 130048
    %s108 = scalar_lea.vmem %s1, 48
    %109 = vst.msk [vmem:[%s108] ss:$8 sm:$0x3] %vm107, %v106
    %s110 = scalar_lea.vmem %s1, 33
    %111 = vst.msk [vmem:[%s110] ss:$8 sm:$0xc] %vm107, %v106
    %s112 = scalar_lea.vmem %s1, 18
    %113 = vst.msk [vmem:[%s112] ss:$8 sm:$0x30] %vm107, %v106
    %s114 = scalar_lea.vmem %s1, 3
    %115 = vst.msk [vmem:[%s114] ss:$8 sm:$0xc0] %vm107, %v106
    %s116 = scalar_lea.vmem [#allocation0], 448
    %v117 = vld [vmem:[%s116] ss:$8 sm:$0xf]
    %s118 = scalar_lea.vmem [#allocation0], 448
    %v119 = vld [vmem:[%s118] ss:$8 sm:$0xf0]
    %vm120 = vcmask 1047556
    %v121 = vsel %vm120, %v119, %v117
    %vm122 = vcmask 130048
    %s123 = scalar_lea.vmem %s1, 52
    %124 = vst.msk [vmem:[%s123] ss:$8 sm:$0x3] %vm122, %v121
    %s125 = scalar_lea.vmem %s1, 37
    %126 = vst.msk [vmem:[%s125] ss:$8 sm:$0xc] %vm122, %v121
    %s127 = scalar_lea.vmem %s1, 22
    %128 = vst.msk [vmem:[%s127] ss:$8 sm:$0x30] %vm122, %v121
    %s129 = scalar_lea.vmem %s1, 7
    %130 = vst.msk [vmem:[%s129] ss:$8 sm:$0xc0] %vm122, %v121
    %s131 = scalar_lea.vmem [#allocation0], 7
    %s132 = smov 3
    %v133 = vld [vmem:[%s131] ss:$16 sm:%s132]
    %s134 = scalar_lea.vmem [#allocation0], 7
    %s135 = smov 12
    %v136 = vld [vmem:[%s134] ss:$16 sm:%s135]
    %vm137 = vcmask 1043458
    %v138 = vsel %vm137, %v136, %v133
    %s139 = scalar_lea.vmem [#allocation0], 7
    %s140 = smov 48
    %v141 = vld [vmem:[%s139] ss:$16 sm:%s140]
    %vm142 = vcmask 1045508
    %v143 = vsel %vm142, %v141, %v138
    %s144 = scalar_lea.vmem [#allocation0], 7
    %s145 = smov 192
    %v146 = vld [vmem:[%s144] ss:$16 sm:%s145]
    %vm147 = vcmask 1047558
    %v148 = vsel %vm147, %v146, %v143
    %149 = vrot.lane.b32.xlu0 %v148, 112
    %v150 = vpop.permute.xlu0 %149
    %vm151 = vcmask 1048448
    %152 = vst.msk [vmem:[%s1] sm:$0xff] %vm151, %v150
    %s153 = scalar_lea.vmem [#allocation0], 263
    %s154 = smov 3
    %v155 = vld [vmem:[%s153] ss:$16 sm:%s154]
    %s156 = scalar_lea.vmem [#allocation0], 263
    %s157 = smov 12
    %v158 = vld [vmem:[%s156] ss:$16 sm:%s157]
    %vm159 = vcmask 1043458
    %v160 = vsel %vm159, %v158, %v155
    %s161 = scalar_lea.vmem [#allocation0], 263
    %s162 = smov 48
    %v163 = vld [vmem:[%s161] ss:$16 sm:%s162]
    %vm164 = vcmask 1045508
    %v165 = vsel %vm164, %v163, %v160
    %s166 = scalar_lea.vmem [#allocation0], 263
    %s167 = smov 192
    %v168 = vld [vmem:[%s166] ss:$16 sm:%s167]
    %vm169 = vcmask 1047558
    %v170 = vsel %vm169, %v168, %v165
    %171 = vrot.lane.b32.xlu0 %v170, 112
    %v172 = vpop.permute.xlu0 %171
    %vm173 = vcmask 1048448
    %s174 = scalar_lea.vmem %s1, 32
    %175 = vst.msk [vmem:[%s174] sm:$0xff] %vm173, %v172
    %s176 = scalar_lea.vmem [#allocation0], 15
    %s177 = smov 3
    %v178 = vld [vmem:[%s176] ss:$16 sm:%s177]
    %s179 = scalar_lea.vmem [#allocation0], 15
    %s180 = smov 12
    %v181 = vld [vmem:[%s179] ss:$16 sm:%s180]
    %vm182 = vcmask 1043458
    %v183 = vsel %vm182, %v181, %v178
    %s184 = scalar_lea.vmem [#allocation0], 15
    %s185 = smov 48
    %v186 = vld [vmem:[%s184] ss:$16 sm:%s185]
    %vm187 = vcmask 1045508
    %v188 = vsel %vm187, %v186, %v183
    %s189 = scalar_lea.vmem [#allocation0], 15
    %s190 = smov 192
    %v191 = vld [vmem:[%s189] ss:$16 sm:%s190]
    %vm192 = vcmask 1047558
    %v193 = vsel %vm192, %v191, %v188
    %194 = vrot.lane.b32.xlu0 %v193, 112
    %v195 = vpop.permute.xlu0 %194
    %vm196 = vcmask 1048448
    %s197 = scalar_lea.vmem %s1, 8
    %198 = vst.msk [vmem:[%s197] sm:$0xff] %vm196, %v195
    %s199 = scalar_lea.vmem [#allocation0], 271
    %s200 = smov 3
    %v201 = vld [vmem:[%s199] ss:$16 sm:%s200]
    %s202 = scalar_lea.vmem [#allocation0], 271
    %s203 = smov 12
    %v204 = vld [vmem:[%s202] ss:$16 sm:%s203]
    %vm205 = vcmask 1043458
    %v206 = vsel %vm205, %v204, %v201
    %s207 = scalar_lea.vmem [#allocation0], 271
    %s208 = smov 48
    %v209 = vld [vmem:[%s207] ss:$16 sm:%s208]
    %vm210 = vcmask 1045508
    %v211 = vsel %vm210, %v209, %v206
    %s212 = scalar_lea.vmem [#allocation0], 271
    %s213 = smov 192
    %v214 = vld [vmem:[%s212] ss:$16 sm:%s213]
    %vm215 = vcmask 1047558
    %v216 = vsel %vm215, %v214, %v211
    %217 = vrot.lane.b32.xlu0 %v216, 112
    %v218 = vpop.permute.xlu0 %217
    %vm219 = vcmask 1048448
    %s220 = scalar_lea.vmem %s1, 40
    %221 = vst.msk [vmem:[%s220] sm:$0xff] %vm219, %v218
    %s222 = scalar_lea.vmem [#allocation0], 135
    %s223 = smov 3
    %v224 = vld [vmem:[%s222] ss:$16 sm:%s223]
    %s225 = scalar_lea.vmem [#allocation0], 135
    %s226 = smov 12
    %v227 = vld [vmem:[%s225] ss:$16 sm:%s226]
    %vm228 = vcmask 1043458
    %v229 = vsel %vm228, %v227, %v224
    %s230 = scalar_lea.vmem [#allocation0], 135
    %s231 = smov 48
    %v232 = vld [vmem:[%s230] ss:$16 sm:%s231]
    %vm233 = vcmask 1045508
    %v234 = vsel %vm233, %v232, %v229
    %s235 = scalar_lea.vmem [#allocation0], 135
    %s236 = smov 192
    %v237 = vld [vmem:[%s235] ss:$16 sm:%s236]
    %vm238 = vcmask 1047558
    %v239 = vsel %vm238, %v237, %v234
    %240 = vrot.lane.b32.xlu0 %v239, 112
    %v241 = vpop.permute.xlu0 %240
    %vm242 = vcmask 1048448
    %s243 = scalar_lea.vmem %s1, 16
    %244 = vst.msk [vmem:[%s243] sm:$0xff] %vm242, %v241
    %s245 = scalar_lea.vmem [#allocation0], 391
    %s246 = smov 3
    %v247 = vld [vmem:[%s245] ss:$16 sm:%s246]
    %s248 = scalar_lea.vmem [#allocation0], 391
    %s249 = smov 12
    %v250 = vld [vmem:[%s248] ss:$16 sm:%s249]
    %vm251 = vcmask 1043458
    %v252 = vsel %vm251, %v250, %v247
    %s253 = scalar_lea.vmem [#allocation0], 391
    %s254 = smov 48
    %v255 = vld [vmem:[%s253] ss:$16 sm:%s254]
    %vm256 = vcmask 1045508
    %v257 = vsel %vm256, %v255, %v252
    %s258 = scalar_lea.vmem [#allocation0], 391
    %s259 = smov 192
    %v260 = vld [vmem:[%s258] ss:$16 sm:%s259]
    %vm261 = vcmask 1047558
    %v262 = vsel %vm261, %v260, %v257
    %263 = vrot.lane.b32.xlu0 %v262, 112
    %v264 = vpop.permute.xlu0 %263
    %vm265 = vcmask 1048448
    %s266 = scalar_lea.vmem %s1, 48
    %267 = vst.msk [vmem:[%s266] sm:$0xff] %vm265, %v264
    %s268 = scalar_lea.vmem [#allocation0], 143
    %s269 = smov 3
    %v270 = vld [vmem:[%s268] ss:$16 sm:%s269]
    %s271 = scalar_lea.vmem [#allocation0], 143
    %s272 = smov 12
    %v273 = vld [vmem:[%s271] ss:$16 sm:%s272]
    %vm274 = vcmask 1043458
    %v275 = vsel %vm274, %v273, %v270
    %s276 = scalar_lea.vmem [#allocation0], 143
    %s277 = smov 48
    %v278 = vld [vmem:[%s276] ss:$16 sm:%s277]
    %vm279 = vcmask 1045508
    %v280 = vsel %vm279, %v278, %v275
    %s281 = scalar_lea.vmem [#allocation0], 143
    %s282 = smov 192
    %v283 = vld [vmem:[%s281] ss:$16 sm:%s282]
    %vm284 = vcmask 1047558
    %v285 = vsel %vm284, %v283, %v280
    %286 = vrot.lane.b32.xlu0 %v285, 112
    %v287 = vpop.permute.xlu0 %286
    %vm288 = vcmask 1048448
    %s289 = scalar_lea.vmem %s1, 24
    %290 = vst.msk [vmem:[%s289] sm:$0xff] %vm288, %v287
    %s291 = scalar_lea.vmem [#allocation0], 399
    %s292 = smov 3
    %v293 = vld [vmem:[%s291] ss:$16 sm:%s292]
    %s294 = scalar_lea.vmem [#allocation0], 399
    %s295 = smov 12
    %v296 = vld [vmem:[%s294] ss:$16 sm:%s295]
    %vm297 = vcmask 1043458
    %v298 = vsel %vm297, %v296, %v293
    %s299 = scalar_lea.vmem [#allocation0], 399
    %s300 = smov 48
    %v301 = vld [vmem:[%s299] ss:$16 sm:%s300]
    %vm302 = vcmask 1045508
    %v303 = vsel %vm302, %v301, %v298
    %s304 = scalar_lea.vmem [#allocation0], 399
    %s305 = smov 192
    %v306 = vld [vmem:[%s304] ss:$16 sm:%s305]
    %vm307 = vcmask 1047558
    %v308 = vsel %vm307, %v306, %v303
    %309 = vrot.lane.b32.xlu0 %v308, 112
    %v310 = vpop.permute.xlu0 %309
    %vm311 = vcmask 1048448
    %s312 = scalar_lea.vmem %s1, 56
    %313 = vst.msk [vmem:[%s312] sm:$0xff] %vm311, %v310
    %s314 = scalar_lea.vmem [#allocation0], 6
    %s315 = smov 3
    %v316 = vld [vmem:[%s314] ss:$16 sm:%s315]
    %s317 = scalar_lea.vmem [#allocation0], 6
    %s318 = smov 12
    %v319 = vld [vmem:[%s317] ss:$16 sm:%s318]
    %vm320 = vcmask 1043458
    %v321 = vsel %vm320, %v319, %v316
    %s322 = scalar_lea.vmem [#allocation0], 6
    %s323 = smov 48
    %v324 = vld [vmem:[%s322] ss:$16 sm:%s323]
    %vm325 = vcmask 1045508
    %v326 = vsel %vm325, %v324, %v321
    %s327 = scalar_lea.vmem [#allocation0], 6
    %s328 = smov 192
    %v329 = vld [vmem:[%s327] ss:$16 sm:%s328]
    %vm330 = vcmask 1047558
    %v331 = vsel %vm330, %v329, %v326
    %332 = vrot.lane.b32.xlu0 %v331, 96
    %v333 = vpop.permute.xlu0 %332
    %vm334 = vcmask 917248
    %335 = vst.msk [vmem:[%s1] sm:$0xff] %vm334, %v333
    %s336 = scalar_lea.vmem [#allocation0], 262
    %s337 = smov 3
    %v338 = vld [vmem:[%s336] ss:$16 sm:%s337]
    %s339 = scalar_lea.vmem [#allocation0], 262
    %s340 = smov 12
    %v341 = vld [vmem:[%s339] ss:$16 sm:%s340]
    %vm342 = vcmask 1043458
    %v343 = vsel %vm342, %v341, %v338
    %s344 = scalar_lea.vmem [#allocation0], 262
    %s345 = smov 48
    %v346 = vld [vmem:[%s344] ss:$16 sm:%s345]
    %vm347 = vcmask 1045508
    %v348 = vsel %vm347, %v346, %v343
    %s349 = scalar_lea.vmem [#allocation0], 262
    %s350 = smov 192
    %v351 = vld [vmem:[%s349] ss:$16 sm:%s350]
    %vm352 = vcmask 1047558
    %v353 = vsel %vm352, %v351, %v348
    %354 = vrot.lane.b32.xlu0 %v353, 96
    %v355 = vpop.permute.xlu0 %354
    %vm356 = vcmask 917248
    %s357 = scalar_lea.vmem %s1, 32
    %358 = vst.msk [vmem:[%s357] sm:$0xff] %vm356, %v355
    %s359 = scalar_lea.vmem [#allocation0], 14
    %s360 = smov 3
    %v361 = vld [vmem:[%s359] ss:$16 sm:%s360]
    %s362 = scalar_lea.vmem [#allocation0], 14
    %s363 = smov 12
    %v364 = vld [vmem:[%s362] ss:$16 sm:%s363]
    %vm365 = vcmask 1043458
    %v366 = vsel %vm365, %v364, %v361
    %s367 = scalar_lea.vmem [#allocation0], 14
    %s368 = smov 48
    %v369 = vld [vmem:[%s367] ss:$16 sm:%s368]
    %vm370 = vcmask 1045508
    %v371 = vsel %vm370, %v369, %v366
    %s372 = scalar_lea.vmem [#allocation0], 14
    %s373 = smov 192
    %v374 = vld [vmem:[%s372] ss:$16 sm:%s373]
    %vm375 = vcmask 1047558
    %v376 = vsel %vm375, %v374, %v371
    %377 = vrot.lane.b32.xlu0 %v376, 96
    %v378 = vpop.permute.xlu0 %377
    %vm379 = vcmask 917248
    %s380 = scalar_lea.vmem %s1, 8
    %381 = vst.msk [vmem:[%s380] sm:$0xff] %vm379, %v378
    %s382 = scalar_lea.vmem [#allocation0], 270
    %s383 = smov 3
    %v384 = vld [vmem:[%s382] ss:$16 sm:%s383]
    %s385 = scalar_lea.vmem [#allocation0], 270
    %s386 = smov 12
    %v387 = vld [vmem:[%s385] ss:$16 sm:%s386]
    %vm388 = vcmask 1043458
    %v389 = vsel %vm388, %v387, %v384
    %s390 = scalar_lea.vmem [#allocation0], 270
    %s391 = smov 48
    %v392 = vld [vmem:[%s390] ss:$16 sm:%s391]
    %vm393 = vcmask 1045508
    %v394 = vsel %vm393, %v392, %v389
    %s395 = scalar_lea.vmem [#allocation0], 270
    %s396 = smov 192
    %v397 = vld [vmem:[%s395] ss:$16 sm:%s396]
    %vm398 = vcmask 1047558
    %v399 = vsel %vm398, %v397, %v394
    %400 = vrot.lane.b32.xlu0 %v399, 96
    %v401 = vpop.permute.xlu0 %400
    %vm402 = vcmask 917248
    %s403 = scalar_lea.vmem %s1, 40
    %404 = vst.msk [vmem:[%s403] sm:$0xff] %vm402, %v401
    %s405 = scalar_lea.vmem [#allocation0], 134
    %s406 = smov 3
    %v407 = vld [vmem:[%s405] ss:$16 sm:%s406]
    %s408 = scalar_lea.vmem [#allocation0], 134
    %s409 = smov 12
    %v410 = vld [vmem:[%s408] ss:$16 sm:%s409]
    %vm411 = vcmask 1043458
    %v412 = vsel %vm411, %v410, %v407
    %s413 = scalar_lea.vmem [#allocation0], 134
    %s414 = smov 48
    %v415 = vld [vmem:[%s413] ss:$16 sm:%s414]
    %vm416 = vcmask 1045508
    %v417 = vsel %vm416, %v415, %v412
    %s418 = scalar_lea.vmem [#allocation0], 134
    %s419 = smov 192
    %v420 = vld [vmem:[%s418] ss:$16 sm:%s419]
    %vm421 = vcmask 1047558
    %v422 = vsel %vm421, %v420, %v417
    %423 = vrot.lane.b32.xlu0 %v422, 96
    %v424 = vpop.permute.xlu0 %423
    %vm425 = vcmask 917248
    %s426 = scalar_lea.vmem %s1, 16
    %427 = vst.msk [vmem:[%s426] sm:$0xff] %vm425, %v424
    %s428 = scalar_lea.vmem [#allocation0], 390
    %s429 = smov 3
    %v430 = vld [vmem:[%s428] ss:$16 sm:%s429]
    %s431 = scalar_lea.vmem [#allocation0], 390
    %s432 = smov 12
    %v433 = vld [vmem:[%s431] ss:$16 sm:%s432]
    %vm434 = vcmask 1043458
    %v435 = vsel %vm434, %v433, %v430
    %s436 = scalar_lea.vmem [#allocation0], 390
    %s437 = smov 48
    %v438 = vld [vmem:[%s436] ss:$16 sm:%s437]
    %vm439 = vcmask 1045508
    %v440 = vsel %vm439, %v438, %v435
    %s441 = scalar_lea.vmem [#allocation0], 390
    %s442 = smov 192
    %v443 = vld [vmem:[%s441] ss:$16 sm:%s442]
    %vm444 = vcmask 1047558
    %v445 = vsel %vm444, %v443, %v440
    %446 = vrot.lane.b32.xlu0 %v445, 96
    %v447 = vpop.permute.xlu0 %446
    %vm448 = vcmask 917248
    %s449 = scalar_lea.vmem %s1, 48
    %450 = vst.msk [vmem:[%s449] sm:$0xff] %vm448, %v447
    %s451 = scalar_lea.vmem [#allocation0], 142
    %s452 = smov 3
    %v453 = vld [vmem:[%s451] ss:$16 sm:%s452]
    %s454 = scalar_lea.vmem [#allocation0], 142
    %s455 = smov 12
    %v456 = vld [vmem:[%s454] ss:$16 sm:%s455]
    %vm457 = vcmask 1043458
    %v458 = vsel %vm457, %v456, %v453
    %s459 = scalar_lea.vmem [#allocation0], 142
    %s460 = smov 48
    %v461 = vld [vmem:[%s459] ss:$16 sm:%s460]
    %vm462 = vcmask 1045508
    %v463 = vsel %vm462, %v461, %v458
    %s464 = scalar_lea.vmem [#allocation0], 142
    %s465 = smov 192
    %v466 = vld [vmem:[%s464] ss:$16 sm:%s465]
    %vm467 = vcmask 1047558
    %v468 = vsel %vm467, %v466, %v463
    %469 = vrot.lane.b32.xlu0 %v468, 96
    %v470 = vpop.permute.xlu0 %469
    %vm471 = vcmask 917248
    %s472 = scalar_lea.vmem %s1, 24
    %473 = vst.msk [vmem:[%s472] sm:$0xff] %vm471, %v470
    %s474 = scalar_lea.vmem [#allocation0], 398
    %s475 = smov 3
    %v476 = vld [vmem:[%s474] ss:$16 sm:%s475]
    %s477 = scalar_lea.vmem [#allocation0], 398
    %s478 = smov 12
    %v479 = vld [vmem:[%s477] ss:$16 sm:%s478]
    %vm480 = vcmask 1043458
    %v481 = vsel %vm480, %v479, %v476
    %s482 = scalar_lea.vmem [#allocation0], 398
    %s483 = smov 48
    %v484 = vld [vmem:[%s482] ss:$16 sm:%s483]
    %vm485 = vcmask 1045508
    %v486 = vsel %vm485, %v484, %v481
    %s487 = scalar_lea.vmem [#allocation0], 398
    %s488 = smov 192
    %v489 = vld [vmem:[%s487] ss:$16 sm:%s488]
    %vm490 = vcmask 1047558
    %v491 = vsel %vm490, %v489, %v486
    %492 = vrot.lane.b32.xlu0 %v491, 96
    %v493 = vpop.permute.xlu0 %492
    %vm494 = vcmask 917248
    %s495 = scalar_lea.vmem %s1, 56
    %496 = vst.msk [vmem:[%s495] sm:$0xff] %vm494, %v493
    %s497 = scalar_lea.vmem [#allocation0], 5
    %s498 = smov 3
    %v499 = vld [vmem:[%s497] ss:$16 sm:%s498]
    %s500 = scalar_lea.vmem [#allocation0], 5
    %s501 = smov 12
    %v502 = vld [vmem:[%s500] ss:$16 sm:%s501]
    %vm503 = vcmask 1043458
    %v504 = vsel %vm503, %v502, %v499
    %s505 = scalar_lea.vmem [#allocation0], 5
    %s506 = smov 48
    %v507 = vld [vmem:[%s505] ss:$16 sm:%s506]
    %vm508 = vcmask 1045508
    %v509 = vsel %vm508, %v507, %v504
    %s510 = scalar_lea.vmem [#allocation0], 5
    %s511 = smov 192
    %v512 = vld [vmem:[%s510] ss:$16 sm:%s511]
    %vm513 = vcmask 1047558
    %v514 = vsel %vm513, %v512, %v509
    %515 = vrot.lane.b32.xlu0 %v514, 80
    %v516 = vpop.permute.xlu0 %515
    %vm517 = vcmask 786048
    %518 = vst.msk [vmem:[%s1] sm:$0xff] %vm517, %v516
    %s519 = scalar_lea.vmem [#allocation0], 261
    %s520 = smov 3
    %v521 = vld [vmem:[%s519] ss:$16 sm:%s520]
    %s522 = scalar_lea.vmem [#allocation0], 261
    %s523 = smov 12
    %v524 = vld [vmem:[%s522] ss:$16 sm:%s523]
    %vm525 = vcmask 1043458
    %v526 = vsel %vm525, %v524, %v521
    %s527 = scalar_lea.vmem [#allocation0], 261
    %s528 = smov 48
    %v529 = vld [vmem:[%s527] ss:$16 sm:%s528]
    %vm530 = vcmask 1045508
    %v531 = vsel %vm530, %v529, %v526
    %s532 = scalar_lea.vmem [#allocation0], 261
    %s533 = smov 192
    %v534 = vld [vmem:[%s532] ss:$16 sm:%s533]
    %vm535 = vcmask 1047558
    %v536 = vsel %vm535, %v534, %v531
    %537 = vrot.lane.b32.xlu0 %v536, 80
    %v538 = vpop.permute.xlu0 %537
    %vm539 = vcmask 786048
    %s540 = scalar_lea.vmem %s1, 32
    %541 = vst.msk [vmem:[%s540] sm:$0xff] %vm539, %v538
    %s542 = scalar_lea.vmem [#allocation0], 13
    %s543 = smov 3
    %v544 = vld [vmem:[%s542] ss:$16 sm:%s543]
    %s545 = scalar_lea.vmem [#allocation0], 13
    %s546 = smov 12
    %v547 = vld [vmem:[%s545] ss:$16 sm:%s546]
    %vm548 = vcmask 1043458
    %v549 = vsel %vm548, %v547, %v544
    %s550 = scalar_lea.vmem [#allocation0], 13
    %s551 = smov 48
    %v552 = vld [vmem:[%s550] ss:$16 sm:%s551]
    %vm553 = vcmask 1045508
    %v554 = vsel %vm553, %v552, %v549
    %s555 = scalar_lea.vmem [#allocation0], 13
    %s556 = smov 192
    %v557 = vld [vmem:[%s555] ss:$16 sm:%s556]
    %vm558 = vcmask 1047558
    %v559 = vsel %vm558, %v557, %v554
    %560 = vrot.lane.b32.xlu0 %v559, 80
    %v561 = vpop.permute.xlu0 %560
    %vm562 = vcmask 786048
    %s563 = scalar_lea.vmem %s1, 8
    %564 = vst.msk [vmem:[%s563] sm:$0xff] %vm562, %v561
    %s565 = scalar_lea.vmem [#allocation0], 269
    %s566 = smov 3
    %v567 = vld [vmem:[%s565] ss:$16 sm:%s566]
    %s568 = scalar_lea.vmem [#allocation0], 269
    %s569 = smov 12
    %v570 = vld [vmem:[%s568] ss:$16 sm:%s569]
    %vm571 = vcmask 1043458
    %v572 = vsel %vm571, %v570, %v567
    %s573 = scalar_lea.vmem [#allocation0], 269
    %s574 = smov 48
    %v575 = vld [vmem:[%s573] ss:$16 sm:%s574]
    %vm576 = vcmask 1045508
    %v577 = vsel %vm576, %v575, %v572
    %s578 = scalar_lea.vmem [#allocation0], 269
    %s579 = smov 192
    %v580 = vld [vmem:[%s578] ss:$16 sm:%s579]
    %vm581 = vcmask 1047558
    %v582 = vsel %vm581, %v580, %v577
    %583 = vrot.lane.b32.xlu0 %v582, 80
    %v584 = vpop.permute.xlu0 %583
    %vm585 = vcmask 786048
    %s586 = scalar_lea.vmem %s1, 40
    %587 = vst.msk [vmem:[%s586] sm:$0xff] %vm585, %v584
    %s588 = scalar_lea.vmem [#allocation0], 133
    %s589 = smov 3
    %v590 = vld [vmem:[%s588] ss:$16 sm:%s589]
    %s591 = scalar_lea.vmem [#allocation0], 133
    %s592 = smov 12
    %v593 = vld [vmem:[%s591] ss:$16 sm:%s592]
    %vm594 = vcmask 1043458
    %v595 = vsel %vm594, %v593, %v590
    %s596 = scalar_lea.vmem [#allocation0], 133
    %s597 = smov 48
    %v598 = vld [vmem:[%s596] ss:$16 sm:%s597]
    %vm599 = vcmask 1045508
    %v600 = vsel %vm599, %v598, %v595
    %s601 = scalar_lea.vmem [#allocation0], 133
    %s602 = smov 192
    %v603 = vld [vmem:[%s601] ss:$16 sm:%s602]
    %vm604 = vcmask 1047558
    %v605 = vsel %vm604, %v603, %v600
    %606 = vrot.lane.b32.xlu0 %v605, 80
    %v607 = vpop.permute.xlu0 %606
    %vm608 = vcmask 786048
    %s609 = scalar_lea.vmem %s1, 16
    %610 = vst.msk [vmem:[%s609] sm:$0xff] %vm608, %v607
    %s611 = scalar_lea.vmem [#allocation0], 389
    %s612 = smov 3
    %v613 = vld [vmem:[%s611] ss:$16 sm:%s612]
    %s614 = scalar_lea.vmem [#allocation0], 389
    %s615 = smov 12
    %v616 = vld [vmem:[%s614] ss:$16 sm:%s615]
    %vm617 = vcmask 1043458
    %v618 = vsel %vm617, %v616, %v613
    %s619 = scalar_lea.vmem [#allocation0], 389
    %s620 = smov 48
    %v621 = vld [vmem:[%s619] ss:$16 sm:%s620]
    %vm622 = vcmask 1045508
    %v623 = vsel %vm622, %v621, %v618
    %s624 = scalar_lea.vmem [#allocation0], 389
    %s625 = smov 192
    %v626 = vld [vmem:[%s624] ss:$16 sm:%s625]
    %vm627 = vcmask 1047558
    %v628 = vsel %vm627, %v626, %v623
    %629 = vrot.lane.b32.xlu0 %v628, 80
    %v630 = vpop.permute.xlu0 %629
    %vm631 = vcmask 786048
    %s632 = scalar_lea.vmem %s1, 48
    %633 = vst.msk [vmem:[%s632] sm:$0xff] %vm631, %v630
    %s634 = scalar_lea.vmem [#allocation0], 141
    %s635 = smov 3
    %v636 = vld [vmem:[%s634] ss:$16 sm:%s635]
    %s637 = scalar_lea.vmem [#allocation0], 141
    %s638 = smov 12
    %v639 = vld [vmem:[%s637] ss:$16 sm:%s638]
    %vm640 = vcmask 1043458
    %v641 = vsel %vm640, %v639, %v636
    %s642 = scalar_lea.vmem [#allocation0], 141
    %s643 = smov 48
    %v644 = vld [vmem:[%s642] ss:$16 sm:%s643]
    %vm645 = vcmask 1045508
    %v646 = vsel %vm645, %v644, %v641
    %s647 = scalar_lea.vmem [#allocation0], 141
    %s648 = smov 192
    %v649 = vld [vmem:[%s647] ss:$16 sm:%s648]
    %vm650 = vcmask 1047558
    %v651 = vsel %vm650, %v649, %v646
    %652 = vrot.lane.b32.xlu0 %v651, 80
    %v653 = vpop.permute.xlu0 %652
    %vm654 = vcmask 786048
    %s655 = scalar_lea.vmem %s1, 24
    %656 = vst.msk [vmem:[%s655] sm:$0xff] %vm654, %v653
    %s657 = scalar_lea.vmem [#allocation0], 397
    %s658 = smov 3
    %v659 = vld [vmem:[%s657] ss:$16 sm:%s658]
    %s660 = scalar_lea.vmem [#allocation0], 397
    %s661 = smov 12
    %v662 = vld [vmem:[%s660] ss:$16 sm:%s661]
    %vm663 = vcmask 1043458
    %v664 = vsel %vm663, %v662, %v659
    %s665 = scalar_lea.vmem [#allocation0], 397
    %s666 = smov 48
    %v667 = vld [vmem:[%s665] ss:$16 sm:%s666]
    %vm668 = vcmask 1045508
    %v669 = vsel %vm668, %v667, %v664
    %s670 = scalar_lea.vmem [#allocation0], 397
    %s671 = smov 192
    %v672 = vld [vmem:[%s670] ss:$16 sm:%s671]
    %vm673 = vcmask 1047558
    %v674 = vsel %vm673, %v672, %v669
    %675 = vrot.lane.b32.xlu0 %v674, 80
    %v676 = vpop.permute.xlu0 %675
    %vm677 = vcmask 786048
    %s678 = scalar_lea.vmem %s1, 56
    %679 = vst.msk [vmem:[%s678] sm:$0xff] %vm677, %v676
    %s680 = scalar_lea.vmem [#allocation0], 4
    %s681 = smov 3
    %v682 = vld [vmem:[%s680] ss:$16 sm:%s681]
    %s683 = scalar_lea.vmem [#allocation0], 4
    %s684 = smov 12
    %v685 = vld [vmem:[%s683] ss:$16 sm:%s684]
    %vm686 = vcmask 1043458
    %v687 = vsel %vm686, %v685, %v682
    %s688 = scalar_lea.vmem [#allocation0], 4
    %s689 = smov 48
    %v690 = vld [vmem:[%s688] ss:$16 sm:%s689]
    %vm691 = vcmask 1045508
    %v692 = vsel %vm691, %v690, %v687
    %s693 = scalar_lea.vmem [#allocation0], 4
    %s694 = smov 192
    %v695 = vld [vmem:[%s693] ss:$16 sm:%s694]
    %vm696 = vcmask 1047558
    %v697 = vsel %vm696, %v695, %v692
    %698 = vrot.lane.b32.xlu0 %v697, 64
    %v699 = vpop.permute.xlu0 %698
    %vm700 = vcmask 654848
    %701 = vst.msk [vmem:[%s1] sm:$0xff] %vm700, %v699
    %s702 = scalar_lea.vmem [#allocation0], 260
    %s703 = smov 3
    %v704 = vld [vmem:[%s702] ss:$16 sm:%s703]
    %s705 = scalar_lea.vmem [#allocation0], 260
    %s706 = smov 12
    %v707 = vld [vmem:[%s705] ss:$16 sm:%s706]
    %vm708 = vcmask 1043458
    %v709 = vsel %vm708, %v707, %v704
    %s710 = scalar_lea.vmem [#allocation0], 260
    %s711 = smov 48
    %v712 = vld [vmem:[%s710] ss:$16 sm:%s711]
    %vm713 = vcmask 1045508
    %v714 = vsel %vm713, %v712, %v709
    %s715 = scalar_lea.vmem [#allocation0], 260
    %s716 = smov 192
    %v717 = vld [vmem:[%s715] ss:$16 sm:%s716]
    %vm718 = vcmask 1047558
    %v719 = vsel %vm718, %v717, %v714
    %720 = vrot.lane.b32.xlu0 %v719, 64
    %v721 = vpop.permute.xlu0 %720
    %vm722 = vcmask 654848
    %s723 = scalar_lea.vmem %s1, 32
    %724 = vst.msk [vmem:[%s723] sm:$0xff] %vm722, %v721
    %s725 = scalar_lea.vmem [#allocation0], 12
    %s726 = smov 3
    %v727 = vld [vmem:[%s725] ss:$16 sm:%s726]
    %s728 = scalar_lea.vmem [#allocation0], 12
    %s729 = smov 12
    %v730 = vld [vmem:[%s728] ss:$16 sm:%s729]
    %vm731 = vcmask 1043458
    %v732 = vsel %vm731, %v730, %v727
    %s733 = scalar_lea.vmem [#allocation0], 12
    %s734 = smov 48
    %v735 = vld [vmem:[%s733] ss:$16 sm:%s734]
    %vm736 = vcmask 1045508
    %v737 = vsel %vm736, %v735, %v732
    %s738 = scalar_lea.vmem [#allocation0], 12
    %s739 = smov 192
    %v740 = vld [vmem:[%s738] ss:$16 sm:%s739]
    %vm741 = vcmask 1047558
    %v742 = vsel %vm741, %v740, %v737
    %743 = vrot.lane.b32.xlu0 %v742, 64
    %v744 = vpop.permute.xlu0 %743
    %vm745 = vcmask 654848
    %s746 = scalar_lea.vmem %s1, 8
    %747 = vst.msk [vmem:[%s746] sm:$0xff] %vm745, %v744
    %s748 = scalar_lea.vmem [#allocation0], 268
    %s749 = smov 3
    %v750 = vld [vmem:[%s748] ss:$16 sm:%s749]
    %s751 = scalar_lea.vmem [#allocation0], 268
    %s752 = smov 12
    %v753 = vld [vmem:[%s751] ss:$16 sm:%s752]
    %vm754 = vcmask 1043458
    %v755 = vsel %vm754, %v753, %v750
    %s756 = scalar_lea.vmem [#allocation0], 268
    %s757 = smov 48
    %v758 = vld [vmem:[%s756] ss:$16 sm:%s757]
    %vm759 = vcmask 1045508
    %v760 = vsel %vm759, %v758, %v755
    %s761 = scalar_lea.vmem [#allocation0], 268
    %s762 = smov 192
    %v763 = vld [vmem:[%s761] ss:$16 sm:%s762]
    %vm764 = vcmask 1047558
    %v765 = vsel %vm764, %v763, %v760
    %766 = vrot.lane.b32.xlu0 %v765, 64
    %v767 = vpop.permute.xlu0 %766
    %vm768 = vcmask 654848
    %s769 = scalar_lea.vmem %s1, 40
    %770 = vst.msk [vmem:[%s769] sm:$0xff] %vm768, %v767
    %s771 = scalar_lea.vmem [#allocation0], 132
    %s772 = smov 3
    %v773 = vld [vmem:[%s771] ss:$16 sm:%s772]
    %s774 = scalar_lea.vmem [#allocation0], 132
    %s775 = smov 12
    %v776 = vld [vmem:[%s774] ss:$16 sm:%s775]
    %vm777 = vcmask 1043458
    %v778 = vsel %vm777, %v776, %v773
    %s779 = scalar_lea.vmem [#allocation0], 132
    %s780 = smov 48
    %v781 = vld [vmem:[%s779] ss:$16 sm:%s780]
    %vm782 = vcmask 1045508
    %v783 = vsel %vm782, %v781, %v778
    %s784 = scalar_lea.vmem [#allocation0], 132
    %s785 = smov 192
    %v786 = vld [vmem:[%s784] ss:$16 sm:%s785]
    %vm787 = vcmask 1047558
    %v788 = vsel %vm787, %v786, %v783
    %789 = vrot.lane.b32.xlu0 %v788, 64
    %v790 = vpop.permute.xlu0 %789
    %vm791 = vcmask 654848
    %s792 = scalar_lea.vmem %s1, 16
    %793 = vst.msk [vmem:[%s792] sm:$0xff] %vm791, %v790
    %s794 = scalar_lea.vmem [#allocation0], 388
    %s795 = smov 3
    %v796 = vld [vmem:[%s794] ss:$16 sm:%s795]
    %s797 = scalar_lea.vmem [#allocation0], 388
    %s798 = smov 12
    %v799 = vld [vmem:[%s797] ss:$16 sm:%s798]
    %vm800 = vcmask 1043458
    %v801 = vsel %vm800, %v799, %v796
    %s802 = scalar_lea.vmem [#allocation0], 388
    %s803 = smov 48
    %v804 = vld [vmem:[%s802] ss:$16 sm:%s803]
    %vm805 = vcmask 1045508
    %v806 = vsel %vm805, %v804, %v801
    %s807 = scalar_lea.vmem [#allocation0], 388
    %s808 = smov 192
    %v809 = vld [vmem:[%s807] ss:$16 sm:%s808]
    %vm810 = vcmask 1047558
    %v811 = vsel %vm810, %v809, %v806
    %812 = vrot.lane.b32.xlu0 %v811, 64
    %v813 = vpop.permute.xlu0 %812
    %vm814 = vcmask 654848
    %s815 = scalar_lea.vmem %s1, 48
    %816 = vst.msk [vmem:[%s815] sm:$0xff] %vm814, %v813
    %s817 = scalar_lea.vmem [#allocation0], 140
    %s818 = smov 3
    %v819 = vld [vmem:[%s817] ss:$16 sm:%s818]
    %s820 = scalar_lea.vmem [#allocation0], 140
    %s821 = smov 12
    %v822 = vld [vmem:[%s820] ss:$16 sm:%s821]
    %vm823 = vcmask 1043458
    %v824 = vsel %vm823, %v822, %v819
    %s825 = scalar_lea.vmem [#allocation0], 140
    %s826 = smov 48
    %v827 = vld [vmem:[%s825] ss:$16 sm:%s826]
    %vm828 = vcmask 1045508
    %v829 = vsel %vm828, %v827, %v824
    %s830 = scalar_lea.vmem [#allocation0], 140
    %s831 = smov 192
    %v832 = vld [vmem:[%s830] ss:$16 sm:%s831]
    %vm833 = vcmask 1047558
    %v834 = vsel %vm833, %v832, %v829
    %835 = vrot.lane.b32.xlu0 %v834, 64
    %v836 = vpop.permute.xlu0 %835
    %vm837 = vcmask 654848
    %s838 = scalar_lea.vmem %s1, 24
    %839 = vst.msk [vmem:[%s838] sm:$0xff] %vm837, %v836
    %s840 = scalar_lea.vmem [#allocation0], 396
    %s841 = smov 3
    %v842 = vld [vmem:[%s840] ss:$16 sm:%s841]
    %s843 = scalar_lea.vmem [#allocation0], 396
    %s844 = smov 12
    %v845 = vld [vmem:[%s843] ss:$16 sm:%s844]
    %vm846 = vcmask 1043458
    %v847 = vsel %vm846, %v845, %v842
    %s848 = scalar_lea.vmem [#allocation0], 396
    %s849 = smov 48
    %v850 = vld [vmem:[%s848] ss:$16 sm:%s849]
    %vm851 = vcmask 1045508
    %v852 = vsel %vm851, %v850, %v847
    %s853 = scalar_lea.vmem [#allocation0], 396
    %s854 = smov 192
    %v855 = vld [vmem:[%s853] ss:$16 sm:%s854]
    %vm856 = vcmask 1047558
    %v857 = vsel %vm856, %v855, %v852
    %858 = vrot.lane.b32.xlu0 %v857, 64
    %v859 = vpop.permute.xlu0 %858
    %vm860 = vcmask 654848
    %s861 = scalar_lea.vmem %s1, 56
    %862 = vst.msk [vmem:[%s861] sm:$0xff] %vm860, %v859
    %s863 = scalar_lea.vmem [#allocation0], 3
    %s864 = smov 3
    %v865 = vld [vmem:[%s863] ss:$16 sm:%s864]
    %s866 = scalar_lea.vmem [#allocation0], 3
    %s867 = smov 12
    %v868 = vld [vmem:[%s866] ss:$16 sm:%s867]
    %vm869 = vcmask 1043458
    %v870 = vsel %vm869, %v868, %v865
    %s871 = scalar_lea.vmem [#allocation0], 3
    %s872 = smov 48
    %v873 = vld [vmem:[%s871] ss:$16 sm:%s872]
    %vm874 = vcmask 1045508
    %v875 = vsel %vm874, %v873, %v870
    %s876 = scalar_lea.vmem [#allocation0], 3
    %s877 = smov 192
    %v878 = vld [vmem:[%s876] ss:$16 sm:%s877]
    %vm879 = vcmask 1047558
    %v880 = vsel %vm879, %v878, %v875
    %881 = vrot.lane.b32.xlu0 %v880, 48
    %v882 = vpop.permute.xlu0 %881
    %vm883 = vcmask 523648
    %884 = vst.msk [vmem:[%s1] sm:$0xff] %vm883, %v882
    %s885 = scalar_lea.vmem [#allocation0], 259
    %s886 = smov 3
    %v887 = vld [vmem:[%s885] ss:$16 sm:%s886]
    %s888 = scalar_lea.vmem [#allocation0], 259
    %s889 = smov 12
    %v890 = vld [vmem:[%s888] ss:$16 sm:%s889]
    %vm891 = vcmask 1043458
    %v892 = vsel %vm891, %v890, %v887
    %s893 = scalar_lea.vmem [#allocation0], 259
    %s894 = smov 48
    %v895 = vld [vmem:[%s893] ss:$16 sm:%s894]
    %vm896 = vcmask 1045508
    %v897 = vsel %vm896, %v895, %v892
    %s898 = scalar_lea.vmem [#allocation0], 259
    %s899 = smov 192
    %v900 = vld [vmem:[%s898] ss:$16 sm:%s899]
    %vm901 = vcmask 1047558
    %v902 = vsel %vm901, %v900, %v897
    %903 = vrot.lane.b32.xlu0 %v902, 48
    %v904 = vpop.permute.xlu0 %903
    %vm905 = vcmask 523648
    %s906 = scalar_lea.vmem %s1, 32
    %907 = vst.msk [vmem:[%s906] sm:$0xff] %vm905, %v904
    %s908 = scalar_lea.vmem [#allocation0], 11
    %s909 = smov 3
    %v910 = vld [vmem:[%s908] ss:$16 sm:%s909]
    %s911 = scalar_lea.vmem [#allocation0], 11
    %s912 = smov 12
    %v913 = vld [vmem:[%s911] ss:$16 sm:%s912]
    %vm914 = vcmask 1043458
    %v915 = vsel %vm914, %v913, %v910
    %s916 = scalar_lea.vmem [#allocation0], 11
    %s917 = smov 48
    %v918 = vld [vmem:[%s916] ss:$16 sm:%s917]
    %vm919 = vcmask 1045508
    %v920 = vsel %vm919, %v918, %v915
    %s921 = scalar_lea.vmem [#allocation0], 11
    %s922 = smov 192
    %v923 = vld [vmem:[%s921] ss:$16 sm:%s922]
    %vm924 = vcmask 1047558
    %v925 = vsel %vm924, %v923, %v920
    %926 = vrot.lane.b32.xlu0 %v925, 48
    %v927 = vpop.permute.xlu0 %926
    %vm928 = vcmask 523648
    %s929 = scalar_lea.vmem %s1, 8
    %930 = vst.msk [vmem:[%s929] sm:$0xff] %vm928, %v927
    %s931 = scalar_lea.vmem [#allocation0], 267
    %s932 = smov 3
    %v933 = vld [vmem:[%s931] ss:$16 sm:%s932]
    %s934 = scalar_lea.vmem [#allocation0], 267
    %s935 = smov 12
    %v936 = vld [vmem:[%s934] ss:$16 sm:%s935]
    %vm937 = vcmask 1043458
    %v938 = vsel %vm937, %v936, %v933
    %s939 = scalar_lea.vmem [#allocation0], 267
    %s940 = smov 48
    %v941 = vld [vmem:[%s939] ss:$16 sm:%s940]
    %vm942 = vcmask 1045508
    %v943 = vsel %vm942, %v941, %v938
    %s944 = scalar_lea.vmem [#allocation0], 267
    %s945 = smov 192
    %v946 = vld [vmem:[%s944] ss:$16 sm:%s945]
    %vm947 = vcmask 1047558
    %v948 = vsel %vm947, %v946, %v943
    %949 = vrot.lane.b32.xlu0 %v948, 48
    %v950 = vpop.permute.xlu0 %949
    %vm951 = vcmask 523648
    %s952 = scalar_lea.vmem %s1, 40
    %953 = vst.msk [vmem:[%s952] sm:$0xff] %vm951, %v950
    %s954 = scalar_lea.vmem [#allocation0], 131
    %s955 = smov 3
    %v956 = vld [vmem:[%s954] ss:$16 sm:%s955]
    %s957 = scalar_lea.vmem [#allocation0], 131
    %s958 = smov 12
    %v959 = vld [vmem:[%s957] ss:$16 sm:%s958]
    %vm960 = vcmask 1043458
    %v961 = vsel %vm960, %v959, %v956
    %s962 = scalar_lea.vmem [#allocation0], 131
    %s963 = smov 48
    %v964 = vld [vmem:[%s962] ss:$16 sm:%s963]
    %vm965 = vcmask 1045508
    %v966 = vsel %vm965, %v964, %v961
    %s967 = scalar_lea.vmem [#allocation0], 131
    %s968 = smov 192
    %v969 = vld [vmem:[%s967] ss:$16 sm:%s968]
    %vm970 = vcmask 1047558
    %v971 = vsel %vm970, %v969, %v966
    %972 = vrot.lane.b32.xlu0 %v971, 48
    %v973 = vpop.permute.xlu0 %972
    %vm974 = vcmask 523648
    %s975 = scalar_lea.vmem %s1, 16
    %976 = vst.msk [vmem:[%s975] sm:$0xff] %vm974, %v973
    %s977 = scalar_lea.vmem [#allocation0], 387
    %s978 = smov 3
    %v979 = vld [vmem:[%s977] ss:$16 sm:%s978]
    %s980 = scalar_lea.vmem [#allocation0], 387
    %s981 = smov 12
    %v982 = vld [vmem:[%s980] ss:$16 sm:%s981]
    %vm983 = vcmask 1043458
    %v984 = vsel %vm983, %v982, %v979
    %s985 = scalar_lea.vmem [#allocation0], 387
    %s986 = smov 48
    %v987 = vld [vmem:[%s985] ss:$16 sm:%s986]
    %vm988 = vcmask 1045508
    %v989 = vsel %vm988, %v987, %v984
    %s990 = scalar_lea.vmem [#allocation0], 387
    %s991 = smov 192
    %v992 = vld [vmem:[%s990] ss:$16 sm:%s991]
    %vm993 = vcmask 1047558
    %v994 = vsel %vm993, %v992, %v989
    %995 = vrot.lane.b32.xlu0 %v994, 48
    %v996 = vpop.permute.xlu0 %995
    %vm997 = vcmask 523648
    %s998 = scalar_lea.vmem %s1, 48
    %999 = vst.msk [vmem:[%s998] sm:$0xff] %vm997, %v996
    %s1000 = scalar_lea.vmem [#allocation0], 139
    %s1001 = smov 3
    %v1002 = vld [vmem:[%s1000] ss:$16 sm:%s1001]
    %s1003 = scalar_lea.vmem [#allocation0], 139
    %s1004 = smov 12
    %v1005 = vld [vmem:[%s1003] ss:$16 sm:%s1004]
    %vm1006 = vcmask 1043458
    %v1007 = vsel %vm1006, %v1005, %v1002
    %s1008 = scalar_lea.vmem [#allocation0], 139
    %s1009 = smov 48
    %v1010 = vld [vmem:[%s1008] ss:$16 sm:%s1009]
    %vm1011 = vcmask 1045508
    %v1012 = vsel %vm1011, %v1010, %v1007
    %s1013 = scalar_lea.vmem [#allocation0], 139
    %s1014 = smov 192
    %v1015 = vld [vmem:[%s1013] ss:$16 sm:%s1014]
    %vm1016 = vcmask 1047558
    %v1017 = vsel %vm1016, %v1015, %v1012
    %1018 = vrot.lane.b32.xlu0 %v1017, 48
    %v1019 = vpop.permute.xlu0 %1018
    %vm1020 = vcmask 523648
    %s1021 = scalar_lea.vmem %s1, 24
    %1022 = vst.msk [vmem:[%s1021] sm:$0xff] %vm1020, %v1019
    %s1023 = scalar_lea.vmem [#allocation0], 395
    %s1024 = smov 3
    %v1025 = vld [vmem:[%s1023] ss:$16 sm:%s1024]
    %s1026 = scalar_lea.vmem [#allocation0], 395
    %s1027 = smov 12
    %v1028 = vld [vmem:[%s1026] ss:$16 sm:%s1027]
    %vm1029 = vcmask 1043458
    %v1030 = vsel %vm1029, %v1028, %v1025
    %s1031 = scalar_lea.vmem [#allocation0], 395
    %s1032 = smov 48
    %v1033 = vld [vmem:[%s1031] ss:$16 sm:%s1032]
    %vm1034 = vcmask 1045508
    %v1035 = vsel %vm1034, %v1033, %v1030
    %s1036 = scalar_lea.vmem [#allocation0], 395
    %s1037 = smov 192
    %v1038 = vld [vmem:[%s1036] ss:$16 sm:%s1037]
    %vm1039 = vcmask 1047558
    %v1040 = vsel %vm1039, %v1038, %v1035
    %1041 = vrot.lane.b32.xlu0 %v1040, 48
    %v1042 = vpop.permute.xlu0 %1041
    %vm1043 = vcmask 523648
    %s1044 = scalar_lea.vmem %s1, 56
    %1045 = vst.msk [vmem:[%s1044] sm:$0xff] %vm1043, %v1042
    %s1046 = scalar_lea.vmem [#allocation0], 2
    %s1047 = smov 3
    %v1048 = vld [vmem:[%s1046] ss:$16 sm:%s1047]
    %s1049 = scalar_lea.vmem [#allocation0], 2
    %s1050 = smov 12
    %v1051 = vld [vmem:[%s1049] ss:$16 sm:%s1050]
    %vm1052 = vcmask 1043458
    %v1053 = vsel %vm1052, %v1051, %v1048
    %s1054 = scalar_lea.vmem [#allocation0], 2
    %s1055 = smov 48
    %v1056 = vld [vmem:[%s1054] ss:$16 sm:%s1055]
    %vm1057 = vcmask 1045508
    %v1058 = vsel %vm1057, %v1056, %v1053
    %s1059 = scalar_lea.vmem [#allocation0], 2
    %s1060 = smov 192
    %v1061 = vld [vmem:[%s1059] ss:$16 sm:%s1060]
    %vm1062 = vcmask 1047558
    %v1063 = vsel %vm1062, %v1061, %v1058
    %1064 = vrot.lane.b32.xlu0 %v1063, 32
    %v1065 = vpop.permute.xlu0 %1064
    %vm1066 = vcmask 392448
    %1067 = vst.msk [vmem:[%s1] sm:$0xff] %vm1066, %v1065
    %s1068 = scalar_lea.vmem [#allocation0], 258
    %s1069 = smov 3
    %v1070 = vld [vmem:[%s1068] ss:$16 sm:%s1069]
    %s1071 = scalar_lea.vmem [#allocation0], 258
    %s1072 = smov 12
    %v1073 = vld [vmem:[%s1071] ss:$16 sm:%s1072]
    %vm1074 = vcmask 1043458
    %v1075 = vsel %vm1074, %v1073, %v1070
    %s1076 = scalar_lea.vmem [#allocation0], 258
    %s1077 = smov 48
    %v1078 = vld [vmem:[%s1076] ss:$16 sm:%s1077]
    %vm1079 = vcmask 1045508
    %v1080 = vsel %vm1079, %v1078, %v1075
    %s1081 = scalar_lea.vmem [#allocation0], 258
    %s1082 = smov 192
    %v1083 = vld [vmem:[%s1081] ss:$16 sm:%s1082]
    %vm1084 = vcmask 1047558
    %v1085 = vsel %vm1084, %v1083, %v1080
    %1086 = vrot.lane.b32.xlu0 %v1085, 32
    %v1087 = vpop.permute.xlu0 %1086
    %vm1088 = vcmask 392448
    %s1089 = scalar_lea.vmem %s1, 32
    %1090 = vst.msk [vmem:[%s1089] sm:$0xff] %vm1088, %v1087
    %s1091 = scalar_lea.vmem [#allocation0], 10
    %s1092 = smov 3
    %v1093 = vld [vmem:[%s1091] ss:$16 sm:%s1092]
    %s1094 = scalar_lea.vmem [#allocation0], 10
    %s1095 = smov 12
    %v1096 = vld [vmem:[%s1094] ss:$16 sm:%s1095]
    %vm1097 = vcmask 1043458
    %v1098 = vsel %vm1097, %v1096, %v1093
    %s1099 = scalar_lea.vmem [#allocation0], 10
    %s1100 = smov 48
    %v1101 = vld [vmem:[%s1099] ss:$16 sm:%s1100]
    %vm1102 = vcmask 1045508
    %v1103 = vsel %vm1102, %v1101, %v1098
    %s1104 = scalar_lea.vmem [#allocation0], 10
    %s1105 = smov 192
    %v1106 = vld [vmem:[%s1104] ss:$16 sm:%s1105]
    %vm1107 = vcmask 1047558
    %v1108 = vsel %vm1107, %v1106, %v1103
    %1109 = vrot.lane.b32.xlu0 %v1108, 32
    %v1110 = vpop.permute.xlu0 %1109
    %vm1111 = vcmask 392448
    %s1112 = scalar_lea.vmem %s1, 8
    %1113 = vst.msk [vmem:[%s1112] sm:$0xff] %vm1111, %v1110
    %s1114 = scalar_lea.vmem [#allocation0], 266
    %s1115 = smov 3
    %v1116 = vld [vmem:[%s1114] ss:$16 sm:%s1115]
    %s1117 = scalar_lea.vmem [#allocation0], 266
    %s1118 = smov 12
    %v1119 = vld [vmem:[%s1117] ss:$16 sm:%s1118]
    %vm1120 = vcmask 1043458
    %v1121 = vsel %vm1120, %v1119, %v1116
    %s1122 = scalar_lea.vmem [#allocation0], 266
    %s1123 = smov 48
    %v1124 = vld [vmem:[%s1122] ss:$16 sm:%s1123]
    %vm1125 = vcmask 1045508
    %v1126 = vsel %vm1125, %v1124, %v1121
    %s1127 = scalar_lea.vmem [#allocation0], 266
    %s1128 = smov 192
    %v1129 = vld [vmem:[%s1127] ss:$16 sm:%s1128]
    %vm1130 = vcmask 1047558
    %v1131 = vsel %vm1130, %v1129, %v1126
    %1132 = vrot.lane.b32.xlu0 %v1131, 32
    %v1133 = vpop.permute.xlu0 %1132
    %vm1134 = vcmask 392448
    %s1135 = scalar_lea.vmem %s1, 40
    %1136 = vst.msk [vmem:[%s1135] sm:$0xff] %vm1134, %v1133
    %s1137 = scalar_lea.vmem [#allocation0], 130
    %s1138 = smov 3
    %v1139 = vld [vmem:[%s1137] ss:$16 sm:%s1138]
    %s1140 = scalar_lea.vmem [#allocation0], 130
    %s1141 = smov 12
    %v1142 = vld [vmem:[%s1140] ss:$16 sm:%s1141]
    %vm1143 = vcmask 1043458
    %v1144 = vsel %vm1143, %v1142, %v1139
    %s1145 = scalar_lea.vmem [#allocation0], 130
    %s1146 = smov 48
    %v1147 = vld [vmem:[%s1145] ss:$16 sm:%s1146]
    %vm1148 = vcmask 1045508
    %v1149 = vsel %vm1148, %v1147, %v1144
    %s1150 = scalar_lea.vmem [#allocation0], 130
    %s1151 = smov 192
    %v1152 = vld [vmem:[%s1150] ss:$16 sm:%s1151]
    %vm1153 = vcmask 1047558
    %v1154 = vsel %vm1153, %v1152, %v1149
    %1155 = vrot.lane.b32.xlu0 %v1154, 32
    %v1156 = vpop.permute.xlu0 %1155
    %vm1157 = vcmask 392448
    %s1158 = scalar_lea.vmem %s1, 16
    %1159 = vst.msk [vmem:[%s1158] sm:$0xff] %vm1157, %v1156
    %s1160 = scalar_lea.vmem [#allocation0], 386
    %s1161 = smov 3
    %v1162 = vld [vmem:[%s1160] ss:$16 sm:%s1161]
    %s1163 = scalar_lea.vmem [#allocation0], 386
    %s1164 = smov 12
    %v1165 = vld [vmem:[%s1163] ss:$16 sm:%s1164]
    %vm1166 = vcmask 1043458
    %v1167 = vsel %vm1166, %v1165, %v1162
    %s1168 = scalar_lea.vmem [#allocation0], 386
    %s1169 = smov 48
    %v1170 = vld [vmem:[%s1168] ss:$16 sm:%s1169]
    %vm1171 = vcmask 1045508
    %v1172 = vsel %vm1171, %v1170, %v1167
    %s1173 = scalar_lea.vmem [#allocation0], 386
    %s1174 = smov 192
    %v1175 = vld [vmem:[%s1173] ss:$16 sm:%s1174]
    %vm1176 = vcmask 1047558
    %v1177 = vsel %vm1176, %v1175, %v1172
    %1178 = vrot.lane.b32.xlu0 %v1177, 32
    %v1179 = vpop.permute.xlu0 %1178
    %vm1180 = vcmask 392448
    %s1181 = scalar_lea.vmem %s1, 48
    %1182 = vst.msk [vmem:[%s1181] sm:$0xff] %vm1180, %v1179
    %s1183 = scalar_lea.vmem [#allocation0], 138
    %s1184 = smov 3
    %v1185 = vld [vmem:[%s1183] ss:$16 sm:%s1184]
    %s1186 = scalar_lea.vmem [#allocation0], 138
    %s1187 = smov 12
    %v1188 = vld [vmem:[%s1186] ss:$16 sm:%s1187]
    %vm1189 = vcmask 1043458
    %v1190 = vsel %vm1189, %v1188, %v1185
    %s1191 = scalar_lea.vmem [#allocation0], 138
    %s1192 = smov 48
    %v1193 = vld [vmem:[%s1191] ss:$16 sm:%s1192]
    %vm1194 = vcmask 1045508
    %v1195 = vsel %vm1194, %v1193, %v1190
    %s1196 = scalar_lea.vmem [#allocation0], 138
    %s1197 = smov 192
    %v1198 = vld [vmem:[%s1196] ss:$16 sm:%s1197]
    %vm1199 = vcmask 1047558
    %v1200 = vsel %vm1199, %v1198, %v1195
    %1201 = vrot.lane.b32.xlu0 %v1200, 32
    %v1202 = vpop.permute.xlu0 %1201
    %vm1203 = vcmask 392448
    %s1204 = scalar_lea.vmem %s1, 24
    %1205 = vst.msk [vmem:[%s1204] sm:$0xff] %vm1203, %v1202
    %s1206 = scalar_lea.vmem [#allocation0], 394
    %s1207 = smov 3
    %v1208 = vld [vmem:[%s1206] ss:$16 sm:%s1207]
    %s1209 = scalar_lea.vmem [#allocation0], 394
    %s1210 = smov 12
    %v1211 = vld [vmem:[%s1209] ss:$16 sm:%s1210]
    %vm1212 = vcmask 1043458
    %v1213 = vsel %vm1212, %v1211, %v1208
    %s1214 = scalar_lea.vmem [#allocation0], 394
    %s1215 = smov 48
    %v1216 = vld [vmem:[%s1214] ss:$16 sm:%s1215]
    %vm1217 = vcmask 1045508
    %v1218 = vsel %vm1217, %v1216, %v1213
    %s1219 = scalar_lea.vmem [#allocation0], 394
    %s1220 = smov 192
    %v1221 = vld [vmem:[%s1219] ss:$16 sm:%s1220]
    %vm1222 = vcmask 1047558
    %v1223 = vsel %vm1222, %v1221, %v1218
    %1224 = vrot.lane.b32.xlu0 %v1223, 32
    %v1225 = vpop.permute.xlu0 %1224
    %vm1226 = vcmask 392448
    %s1227 = scalar_lea.vmem %s1, 56
    %1228 = vst.msk [vmem:[%s1227] sm:$0xff] %vm1226, %v1225
    %s1229 = scalar_lea.vmem [#allocation0], 1
    %s1230 = smov 3
    %v1231 = vld [vmem:[%s1229] ss:$16 sm:%s1230]
    %s1232 = scalar_lea.vmem [#allocation0], 1
    %s1233 = smov 12
    %v1234 = vld [vmem:[%s1232] ss:$16 sm:%s1233]
    %vm1235 = vcmask 1043458
    %v1236 = vsel %vm1235, %v1234, %v1231
    %s1237 = scalar_lea.vmem [#allocation0], 1
    %s1238 = smov 48
    %v1239 = vld [vmem:[%s1237] ss:$16 sm:%s1238]
    %vm1240 = vcmask 1045508
    %v1241 = vsel %vm1240, %v1239, %v1236
    %s1242 = scalar_lea.vmem [#allocation0], 1
    %s1243 = smov 192
    %v1244 = vld [vmem:[%s1242] ss:$16 sm:%s1243]
    %vm1245 = vcmask 1047558
    %v1246 = vsel %vm1245, %v1244, %v1241
    %1247 = vrot.lane.b32.xlu0 %v1246, 16
    %v1248 = vpop.permute.xlu0 %1247
    %vm1249 = vcmask 261248
    %1250 = vst.msk [vmem:[%s1] sm:$0xff] %vm1249, %v1248
    %s1251 = scalar_lea.vmem [#allocation0], 257
    %s1252 = smov 3
    %v1253 = vld [vmem:[%s1251] ss:$16 sm:%s1252]
    %s1254 = scalar_lea.vmem [#allocation0], 257
    %s1255 = smov 12
    %v1256 = vld [vmem:[%s1254] ss:$16 sm:%s1255]
    %vm1257 = vcmask 1043458
    %v1258 = vsel %vm1257, %v1256, %v1253
    %s1259 = scalar_lea.vmem [#allocation0], 257
    %s1260 = smov 48
    %v1261 = vld [vmem:[%s1259] ss:$16 sm:%s1260]
    %vm1262 = vcmask 1045508
    %v1263 = vsel %vm1262, %v1261, %v1258
    %s1264 = scalar_lea.vmem [#allocation0], 257
    %s1265 = smov 192
    %v1266 = vld [vmem:[%s1264] ss:$16 sm:%s1265]
    %vm1267 = vcmask 1047558
    %v1268 = vsel %vm1267, %v1266, %v1263
    %1269 = vrot.lane.b32.xlu0 %v1268, 16
    %v1270 = vpop.permute.xlu0 %1269
    %vm1271 = vcmask 261248
    %s1272 = scalar_lea.vmem %s1, 32
    %1273 = vst.msk [vmem:[%s1272] sm:$0xff] %vm1271, %v1270
    %s1274 = scalar_lea.vmem [#allocation0], 9
    %s1275 = smov 3
    %v1276 = vld [vmem:[%s1274] ss:$16 sm:%s1275]
    %s1277 = scalar_lea.vmem [#allocation0], 9
    %s1278 = smov 12
    %v1279 = vld [vmem:[%s1277] ss:$16 sm:%s1278]
    %vm1280 = vcmask 1043458
    %v1281 = vsel %vm1280, %v1279, %v1276
    %s1282 = scalar_lea.vmem [#allocation0], 9
    %s1283 = smov 48
    %v1284 = vld [vmem:[%s1282] ss:$16 sm:%s1283]
    %vm1285 = vcmask 1045508
    %v1286 = vsel %vm1285, %v1284, %v1281
    %s1287 = scalar_lea.vmem [#allocation0], 9
    %s1288 = smov 192
    %v1289 = vld [vmem:[%s1287] ss:$16 sm:%s1288]
    %vm1290 = vcmask 1047558
    %v1291 = vsel %vm1290, %v1289, %v1286
    %1292 = vrot.lane.b32.xlu0 %v1291, 16
    %v1293 = vpop.permute.xlu0 %1292
    %vm1294 = vcmask 261248
    %s1295 = scalar_lea.vmem %s1, 8
    %1296 = vst.msk [vmem:[%s1295] sm:$0xff] %vm1294, %v1293
    %s1297 = scalar_lea.vmem [#allocation0], 265
    %s1298 = smov 3
    %v1299 = vld [vmem:[%s1297] ss:$16 sm:%s1298]
    %s1300 = scalar_lea.vmem [#allocation0], 265
    %s1301 = smov 12
    %v1302 = vld [vmem:[%s1300] ss:$16 sm:%s1301]
    %vm1303 = vcmask 1043458
    %v1304 = vsel %vm1303, %v1302, %v1299
    %s1305 = scalar_lea.vmem [#allocation0], 265
    %s1306 = smov 48
    %v1307 = vld [vmem:[%s1305] ss:$16 sm:%s1306]
    %vm1308 = vcmask 1045508
    %v1309 = vsel %vm1308, %v1307, %v1304
    %s1310 = scalar_lea.vmem [#allocation0], 265
    %s1311 = smov 192
    %v1312 = vld [vmem:[%s1310] ss:$16 sm:%s1311]
    %vm1313 = vcmask 1047558
    %v1314 = vsel %vm1313, %v1312, %v1309
    %1315 = vrot.lane.b32.xlu0 %v1314, 16
    %v1316 = vpop.permute.xlu0 %1315
    %vm1317 = vcmask 261248
    %s1318 = scalar_lea.vmem %s1, 40
    %1319 = vst.msk [vmem:[%s1318] sm:$0xff] %vm1317, %v1316
    %s1320 = scalar_lea.vmem [#allocation0], 129
    %s1321 = smov 3
    %v1322 = vld [vmem:[%s1320] ss:$16 sm:%s1321]
    %s1323 = scalar_lea.vmem [#allocation0], 129
    %s1324 = smov 12
    %v1325 = vld [vmem:[%s1323] ss:$16 sm:%s1324]
    %vm1326 = vcmask 1043458
    %v1327 = vsel %vm1326, %v1325, %v1322
    %s1328 = scalar_lea.vmem [#allocation0], 129
    %s1329 = smov 48
    %v1330 = vld [vmem:[%s1328] ss:$16 sm:%s1329]
    %vm1331 = vcmask 1045508
    %v1332 = vsel %vm1331, %v1330, %v1327
    %s1333 = scalar_lea.vmem [#allocation0], 129
    %s1334 = smov 192
    %v1335 = vld [vmem:[%s1333] ss:$16 sm:%s1334]
    %vm1336 = vcmask 1047558
    %v1337 = vsel %vm1336, %v1335, %v1332
    %1338 = vrot.lane.b32.xlu0 %v1337, 16
    %v1339 = vpop.permute.xlu0 %1338
    %vm1340 = vcmask 261248
    %s1341 = scalar_lea.vmem %s1, 16
    %1342 = vst.msk [vmem:[%s1341] sm:$0xff] %vm1340, %v1339
    %s1343 = scalar_lea.vmem [#allocation0], 385
    %s1344 = smov 3
    %v1345 = vld [vmem:[%s1343] ss:$16 sm:%s1344]
    %s1346 = scalar_lea.vmem [#allocation0], 385
    %s1347 = smov 12
    %v1348 = vld [vmem:[%s1346] ss:$16 sm:%s1347]
    %vm1349 = vcmask 1043458
    %v1350 = vsel %vm1349, %v1348, %v1345
    %s1351 = scalar_lea.vmem [#allocation0], 385
    %s1352 = smov 48
    %v1353 = vld [vmem:[%s1351] ss:$16 sm:%s1352]
    %vm1354 = vcmask 1045508
    %v1355 = vsel %vm1354, %v1353, %v1350
    %s1356 = scalar_lea.vmem [#allocation0], 385
    %s1357 = smov 192
    %v1358 = vld [vmem:[%s1356] ss:$16 sm:%s1357]
    %vm1359 = vcmask 1047558
    %v1360 = vsel %vm1359, %v1358, %v1355
    %1361 = vrot.lane.b32.xlu0 %v1360, 16
    %v1362 = vpop.permute.xlu0 %1361
    %vm1363 = vcmask 261248
    %s1364 = scalar_lea.vmem %s1, 48
    %1365 = vst.msk [vmem:[%s1364] sm:$0xff] %vm1363, %v1362
    %s1366 = scalar_lea.vmem [#allocation0], 137
    %s1367 = smov 3
    %v1368 = vld [vmem:[%s1366] ss:$16 sm:%s1367]
    %s1369 = scalar_lea.vmem [#allocation0], 137
    %s1370 = smov 12
    %v1371 = vld [vmem:[%s1369] ss:$16 sm:%s1370]
    %vm1372 = vcmask 1043458
    %v1373 = vsel %vm1372, %v1371, %v1368
    %s1374 = scalar_lea.vmem [#allocation0], 137
    %s1375 = smov 48
    %v1376 = vld [vmem:[%s1374] ss:$16 sm:%s1375]
    %vm1377 = vcmask 1045508
    %v1378 = vsel %vm1377, %v1376, %v1373
    %s1379 = scalar_lea.vmem [#allocation0], 137
    %s1380 = smov 192
    %v1381 = vld [vmem:[%s1379] ss:$16 sm:%s1380]
    %vm1382 = vcmask 1047558
    %v1383 = vsel %vm1382, %v1381, %v1378
    %1384 = vrot.lane.b32.xlu0 %v1383, 16
    %v1385 = vpop.permute.xlu0 %1384
    %vm1386 = vcmask 261248
    %s1387 = scalar_lea.vmem %s1, 24
    %1388 = vst.msk [vmem:[%s1387] sm:$0xff] %vm1386, %v1385
    %s1389 = scalar_lea.vmem [#allocation0], 393
    %s1390 = smov 3
    %v1391 = vld [vmem:[%s1389] ss:$16 sm:%s1390]
    %s1392 = scalar_lea.vmem [#allocation0], 393
    %s1393 = smov 12
    %v1394 = vld [vmem:[%s1392] ss:$16 sm:%s1393]
    %vm1395 = vcmask 1043458
    %v1396 = vsel %vm1395, %v1394, %v1391
    %s1397 = scalar_lea.vmem [#allocation0], 393
    %s1398 = smov 48
    %v1399 = vld [vmem:[%s1397] ss:$16 sm:%s1398]
    %vm1400 = vcmask 1045508
    %v1401 = vsel %vm1400, %v1399, %v1396
    %s1402 = scalar_lea.vmem [#allocation0], 393
    %s1403 = smov 192
    %v1404 = vld [vmem:[%s1402] ss:$16 sm:%s1403]
    %vm1405 = vcmask 1047558
    %v1406 = vsel %vm1405, %v1404, %v1401
    %1407 = vrot.lane.b32.xlu0 %v1406, 16
    %v1408 = vpop.permute.xlu0 %1407
    %vm1409 = vcmask 261248
    %s1410 = scalar_lea.vmem %s1, 56
    %1411 = vst.msk [vmem:[%s1410] sm:$0xff] %vm1409, %v1408
    %1412 = vsyncpa [#allocation1], 1

// kernel: _roi_conv3d_box.1
$region0: #{_roi_conv3d_box.1}
  #allocation0 [shape = 'u32[]', space=smem, size = 0x4, offset = 0x4, fixed_abs, tag = 'smem constant byte address 0x4 - core index']
  #allocation1 [shape = 'u32[72,128]{1,0:T(1,128)}', space=vmem, size = 0x9000, scoped, tag = 'internal scratch']
  #allocation2 [shape = 'f32[16,256]{1,0:T(8,128)}', space=vmem, size = 0x4000, scoped, tag = 'scratch operand']
  %s0 = inlined_call_operand.vmem [shape: f32[16,16], index: 0, kind: input, shape index: {}]
  %s1 = inlined_call_operand.vmem [shape: f32[256,256], index: 1, kind: input, shape index: {}]
  %s2 = inlined_call_operand.vmem [shape: f32[2,16,256], index: 2, kind: input, shape index: {}]
  %s3 = inlined_call_operand.vmem [shape: f32[2,16,256], index: 3, kind: output, shape index: {}]
  %s4 = sld [smem:[#allocation0]]
  $region45: #{_roi_conv3d_box.1} parent=0
    _
  %s6 = ssub.s32 1, %s4
  %s7 = scalar_select 0, %s6, %s4
  loop: start=0, step=1, limit=4
  $region2: #{_roi_conv3d_box.1} parent=0 // loop_pre_header
    _
  $region3: #{_roi_conv3d_box.1} parent=0 // loop_header
    %s9 = sphi 0, %s13
    %p10 = scmp.ge.s32.totalorder %s9, 4
    %s17 = sphi 0, %s17
    %s19 = sphi 0, %s17
    %s20 = sphi 0, %s19
    %s34 = sphi 0, %s20
    %s38 = sphi 0, %s38
    %s40 = sphi 0, %s38
    %s41 = sphi 0, %s40
    %s55 = sphi 0, %s41
    %s61 = sphi 0, %s63
    %s64 = sphi 0, %s61
    %s65 = sphi 0, %s64
    %s81 = sphi 0, %s65
    %s87 = sphi 0, %s89
    %s90 = sphi 0, %s87
    %s91 = sphi 0, %s90
    %s107 = sphi 0, %s91
  $region4: #{_roi_conv3d_box.1} parent=0 // loop_header_branch
    %12 = sbr.rel (%p10) target = $region8
  $region5: #{_roi_conv3d_box.1} parent=0 // loop_body
    %s14 = ssub.s32 %s9, 1
    %s15 = ssub.s32 %s9, 2
    %s16 = sadd.s32 %s9, 1
    %s18 = sadd.s32 %s17, 1
    %p21 = scmp.eq.s32.totalorder %s9, 1
    %p22 = scmp.ne.s32.totalorder %s17, %s19
    %p23 = scmp.eq.s32.totalorder %s9, 0
    %p24 = por %p22, %p23
    %p25 = scmp.ne.s32.totalorder %s17, %s19
    %p26 = scmp.eq.s32.totalorder %s14, 1
    %p27 = por %p25, %p26
    %p28 = scmp.ne.s32.totalorder %s19, %s20
    %p29 = scmp.eq.s32.totalorder %s14, 0
    %p30 = por %p28, %p29
    %p31 = scmp.ne.s32.totalorder %s19, %s20
    %p32 = scmp.eq.s32.totalorder %s15, 1
    %p33 = por %p31, %p32
    %p35 = scmp.ne.s32.totalorder %s20, %s34
    %p36 = scmp.eq.s32.totalorder %s15, 0
    %p37 = por %p35, %p36
    %s39 = sadd.s32 %s38, 1
    %p42 = scmp.eq.s32.totalorder %s9, 1
    %p43 = scmp.ne.s32.totalorder %s38, %s40
    %p44 = scmp.eq.s32.totalorder %s9, 0
    %p45 = por %p43, %p44
    %p46 = scmp.ne.s32.totalorder %s38, %s40
    %p47 = scmp.eq.s32.totalorder %s14, 1
    %p48 = por %p46, %p47
    %p49 = scmp.ne.s32.totalorder %s40, %s41
    %p50 = scmp.eq.s32.totalorder %s14, 0
    %p51 = por %p49, %p50
    %p52 = scmp.ne.s32.totalorder %s40, %s41
    %p53 = scmp.eq.s32.totalorder %s15, 1
    %p54 = por %p52, %p53
    %p56 = scmp.ne.s32.totalorder %s41, %s55
    %p57 = scmp.eq.s32.totalorder %s15, 0
    %p58 = por %p56, %p57
    %s59 = ssub.s32 %s9, %s16
    %p60 = scmp.eq.s32.totalorder %s59, 0
    %s62 = sadd.s32 %s61, 1
    %s63 = scalar_select %p60, %s61, %s62
    %p66 = pneg %p60
    %p67 = scmp.eq.s32.totalorder %s9, 1
    %p68 = por %p66, %p67
    %p69 = scmp.ne.s32.totalorder %s61, %s64
    %p70 = scmp.eq.s32.totalorder %s9, 0
    %p71 = por %p69, %p70
    %p72 = scmp.ne.s32.totalorder %s61, %s64
    %p73 = scmp.eq.s32.totalorder %s14, 1
    %p74 = por %p72, %p73
    %p75 = scmp.ne.s32.totalorder %s64, %s65
    %p76 = scmp.eq.s32.totalorder %s14, 0
    %p77 = por %p75, %p76
    %p78 = scmp.ne.s32.totalorder %s64, %s65
    %p79 = scmp.eq.s32.totalorder %s15, 1
    %p80 = por %p78, %p79
    %p82 = scmp.ne.s32.totalorder %s65, %s81
    %p83 = scmp.eq.s32.totalorder %s15, 0
    %p84 = por %p82, %p83
    %s85 = ssub.s32 %s9, %s16
    %p86 = scmp.eq.s32.totalorder %s85, 0
    %s88 = sadd.s32 %s87, 1
    %s89 = scalar_select %p86, %s87, %s88
    %p92 = pneg %p86
    %p93 = scmp.eq.s32.totalorder %s9, 1
    %p94 = por %p92, %p93
    %p95 = scmp.ne.s32.totalorder %s87, %s90
    %p96 = scmp.eq.s32.totalorder %s9, 0
    %p97 = por %p95, %p96
    %p98 = scmp.ne.s32.totalorder %s87, %s90
    %p99 = scmp.eq.s32.totalorder %s14, 1
    %p100 = por %p98, %p99
    %p101 = scmp.ne.s32.totalorder %s90, %s91
    %p102 = scmp.eq.s32.totalorder %s14, 0
    %p103 = por %p101, %p102
    %p104 = scmp.ne.s32.totalorder %s90, %s91
    %p105 = scmp.eq.s32.totalorder %s15, 1
    %p106 = por %p104, %p105
    %p108 = scmp.ne.s32.totalorder %s91, %s107
    %p109 = scmp.eq.s32.totalorder %s15, 0
    %p110 = por %p108, %p109
    %p111 = scmp.le.s32.totalorder 1, %s9
    %p112 = scmp.lt.s32.totalorder %s9, 3
    %p113 = pnand %p111, %p112
    %p114 = pneg %p113
    // Predicated region
    $region9: #{_roi_conv3d_box.1} parent=5 // pred_check
      _
    $region10: #{_roi_conv3d_box.1} parent=5 // pred_check_branch
      %116 = sbr.rel (%p113) target = $region12
    $region11: #{_roi_conv3d_box.1} parent=5 // pred_region
      %s117 = ssub.s32 %s9, 1
      // Predicated region
      $region13: #{_roi_conv3d_box.1} parent=11 // pred_check
        %p118 = pneg %p30
      $region14: #{_roi_conv3d_box.1} parent=11 // pred_check_branch
        %120 = sbr.rel (%p118) target = $region16
      $region15: #{_roi_conv3d_box.1} parent=11 // pred_region
        _
      $region16: #{_roi_conv3d_box.1} parent=11 // pred_fallthru
        _
      // Predicated region
      $region17: #{_roi_conv3d_box.1} parent=11 // pred_check
        %p121 = pneg %p51
      $region18: #{_roi_conv3d_box.1} parent=11 // pred_check_branch
        %123 = sbr.rel (%p121) target = $region20
      $region19: #{_roi_conv3d_box.1} parent=11 // pred_region
        _
      $region20: #{_roi_conv3d_box.1} parent=11 // pred_fallthru
        _
    $region12: #{_roi_conv3d_box.1} parent=5 // pred_fallthru
      _
    %p124 = scmp.lt.s32.totalorder %s9, 2
    // Predicated region
    $region21: #{_roi_conv3d_box.1} parent=5 // pred_check
      %p125 = pneg %p124
    $region22: #{_roi_conv3d_box.1} parent=5 // pred_check_branch
      %127 = sbr.rel (%p125) target = $region24
    $region23: #{_roi_conv3d_box.1} parent=5 // pred_region
      // Predicated region
      $region25: #{_roi_conv3d_box.1} parent=23 // pred_check
        %p128 = pneg %p71
      $region26: #{_roi_conv3d_box.1} parent=23 // pred_check_branch
        %130 = sbr.rel (%p128) target = $region28
      $region27: #{_roi_conv3d_box.1} parent=23 // pred_region
        %p131 = scmp.lt.s32.totalorder %s9, 1
        %s132 = scalar_select %p131, %s9, 1
        %s133 = smul.addr %s132, 4
        %s134 = smul.addr %s133, 8
        %s135 = scalar_lea.vmem %s2, %s134
      $region28: #{_roi_conv3d_box.1} parent=23 // pred_fallthru
        _
    $region24: #{_roi_conv3d_box.1} parent=5 // pred_fallthru
      _
    %p136 = scmp.le.s32.totalorder 1, %s9
    %p137 = scmp.lt.s32.totalorder %s9, 3
    %p138 = pnand %p136, %p137
    %p139 = pneg %p138
    // Predicated region
    $region29: #{_roi_conv3d_box.1} parent=5 // pred_check
      _
    $region30: #{_roi_conv3d_box.1} parent=5 // pred_check_branch
      %141 = sbr.rel (%p138) target = $region32
    $region31: #{_roi_conv3d_box.1} parent=5 // pred_region
      %s142 = ssub.s32 %s9, 1
      %p143 = pneg %p30
      %p144 = pneg %p27
      %p145 = pneg %p51
      %p146 = pneg %p48
      %p147 = scmp.lt.s32.totalorder %s14, 1
      %s148 = scalar_select %p147, %s14, 1
      %s149 = smul.addr %s148, 4
      %s150 = smul.addr %s149, 8
      %s151 = scalar_lea.vmem %s2, %s150
      %p152 = pneg %p77
      %p153 = pneg %p74
      %p154 = pneg %p103
      %p155 = pneg %p100
      %p156 = scmp.lt.s32.totalorder %s14, 1
      %s157 = scalar_select %p156, %s14, 1
      %s158 = smul.addr %s157, 4
      %s159 = smul.addr %s158, 8
      %s160 = scalar_lea.vmem %s3, %s159
      %p161 = scmp.lt.s32.totalorder %s14, 1
      %s162 = scalar_select %p161, %s14, 1
      %s163 = smul.addr %s162, 4
      %s164 = smul.addr %s163, 8
      %s165 = scalar_lea.vmem %s2, %s164
      %p166 = scmp.lt.s32.totalorder %s14, 1
      %s167 = scalar_select %p166, %s14, 1
      %s168 = smul.addr %s167, 4
      %s169 = smul.addr %s168, 8
      %s170 = scalar_lea.vmem %s3, %s169
      %v171 = vld [vmem:[%s0] sm:$0xff]
      %v172 = vld [vmem:[%s0 + $0x8] sm:$0xff]
      %v173 = vld [vmem:[%s165] sm:$0xff]
      %v174 = vld [vmem:[%s165 + $0x8] sm:$0xff]
      %v175 = vld [vmem:[%s165 + $0x10] sm:$0xff]
      %v176 = vld [vmem:[%s165 + $0x18] sm:$0xff]
      %vm177 = vcmask 130048
      %v179 = vsel %vm177, %v171, 0
      %v182 = vsel %vm177, %v172, 0
      %184 = vmatpush.msra.mxu0 0.0
      %185 = vmatpush.msra.mxu0 0.0
      %186 = vmatpush.msra.mxu0 0.0
      %187 = vmatpush.msra.mxu0 0.0
      %188 = vmatpush.msra.mxu0 0.0
      %189 = vmatpush.msra.mxu0 0.0
      %190 = vmatpush.msra.mxu0 0.0
      %191 = vmatpush.msra.mxu0 0.0
      %192 = vmatpush.msra.mxu0 0.0
      %193 = vmatpush.msra.mxu0 0.0
      %194 = vmatpush.msra.mxu0 0.0
      %195 = vmatpush.msra.mxu0 0.0
      %196 = vmatpush.msra.mxu0 0.0
      %197 = vmatpush.msra.mxu0 0.0
      %198 = vmatpush.msra.mxu0 %v175
      %199 = vmatpush.msra.mxu0 %v173
      %200 = vmatmul.f32.gmra.mxu0 %v179
      %v201 = vpop.f32.mrf.mxu0
      %v202 = vadd.f32 0.0, %v201
      %203 = vmatmul.f32.gmra.mxu0 %v182
      %v204 = vpop.f32.mrf.mxu0
      %v205 = vadd.f32 0.0, %v204
      %206 = vdwg.mxu0
      %207 = vmatpush.msra.mxu0 0.0
      %208 = vmatpush.msra.mxu0 0.0
      %209 = vmatpush.msra.mxu0 0.0
      %210 = vmatpush.msra.mxu0 0.0
      %211 = vmatpush.msra.mxu0 0.0
      %212 = vmatpush.msra.mxu0 0.0
      %213 = vmatpush.msra.mxu0 0.0
      %214 = vmatpush.msra.mxu0 0.0
      %215 = vmatpush.msra.mxu0 0.0
      %216 = vmatpush.msra.mxu0 0.0
      %217 = vmatpush.msra.mxu0 0.0
      %218 = vmatpush.msra.mxu0 0.0
      %219 = vmatpush.msra.mxu0 0.0
      %220 = vmatpush.msra.mxu0 0.0
      %221 = vmatpush.msra.mxu0 %v176
      %222 = vmatpush.msra.mxu0 %v174
      %223 = vmatmul.f32.gmra.mxu0 %v179
      %v224 = vpop.f32.mrf.mxu0
      %v225 = vadd.f32 0.0, %v224
      %226 = vmatmul.f32.gmra.mxu0 %v182
      %v227 = vpop.f32.mrf.mxu0
      %v228 = vadd.f32 0.0, %v227
      %229 = vdwg.mxu0
      %230 = vst [vmem:[#allocation2] sm:$0xff] %v202
      %231 = vst [vmem:[#allocation2 + $0x8] sm:$0xff] %v225
      %232 = vst [vmem:[#allocation2 + $0x10] sm:$0xff] %v205
      %233 = vst [vmem:[#allocation2 + $0x18] sm:$0xff] %v228
      %v234 = vld [vmem:[#allocation2] sm:$0xff]
      %v235 = vld [vmem:[#allocation2 + $0x8] sm:$0xff]
      %v236 = vld [vmem:[#allocation2 + $0x10] sm:$0xff]
      %v237 = vld [vmem:[#allocation2 + $0x18] sm:$0xff]
      %v238 = vld [vmem:[%s1] sm:$0xff]
      %v239 = vld [vmem:[%s1 + $0x8] sm:$0xff]
      %v240 = vld [vmem:[%s1 + $0x10] sm:$0xff]
      %v241 = vld [vmem:[%s1 + $0x18] sm:$0xff]
      %v242 = vld [vmem:[%s1 + $0x20] sm:$0xff]
      %v243 = vld [vmem:[%s1 + $0x28] sm:$0xff]
      %v244 = vld [vmem:[%s1 + $0x30] sm:$0xff]
      %v245 = vld [vmem:[%s1 + $0x38] sm:$0xff]
      %v246 = vld [vmem:[%s1 + $0x40] sm:$0xff]
      %v247 = vld [vmem:[%s1 + $0x48] sm:$0xff]
      %v248 = vld [vmem:[%s1 + $0x50] sm:$0xff]
      %v249 = vld [vmem:[%s1 + $0x58] sm:$0xff]
      %v250 = vld [vmem:[%s1 + $0x60] sm:$0xff]
      %v251 = vld [vmem:[%s1 + $0x68] sm:$0xff]
      %v252 = vld [vmem:[%s1 + $0x70] sm:$0xff]
      %v253 = vld [vmem:[%s1 + $0x78] sm:$0xff]
      %v254 = vld [vmem:[%s1 + $0x80] sm:$0xff]
      %v255 = vld [vmem:[%s1 + $0x88] sm:$0xff]
      %v256 = vld [vmem:[%s1 + $0x90] sm:$0xff]
      %v257 = vld [vmem:[%s1 + $0x98] sm:$0xff]
      %v258 = vld [vmem:[%s1 + $0xa0] sm:$0xff]
      %v259 = vld [vmem:[%s1 + $0xa8] sm:$0xff]
      %v260 = vld [vmem:[%s1 + $0xb0] sm:$0xff]
      %v261 = vld [vmem:[%s1 + $0xb8] sm:$0xff]
      %v262 = vld [vmem:[%s1 + $0xc0] sm:$0xff]
      %v263 = vld [vmem:[%s1 + $0xc8] sm:$0xff]
      %v264 = vld [vmem:[%s1 + $0xd0] sm:$0xff]
      %v265 = vld [vmem:[%s1 + $0xd8] sm:$0xff]
      %v266 = vld [vmem:[%s1 + $0xe0] sm:$0xff]
      %v267 = vld [vmem:[%s1 + $0xe8] sm:$0xff]
      %v268 = vld [vmem:[%s1 + $0xf0] sm:$0xff]
      %v269 = vld [vmem:[%s1 + $0xf8] sm:$0xff]
      %v270 = vld [vmem:[%s1 + $0x100] sm:$0xff]
      %v271 = vld [vmem:[%s1 + $0x108] sm:$0xff]
      %v272 = vld [vmem:[%s1 + $0x110] sm:$0xff]
      %v273 = vld [vmem:[%s1 + $0x118] sm:$0xff]
      %v274 = vld [vmem:[%s1 + $0x120] sm:$0xff]
      %v275 = vld [vmem:[%s1 + $0x128] sm:$0xff]
      %v276 = vld [vmem:[%s1 + $0x130] sm:$0xff]
      %v277 = vld [vmem:[%s1 + $0x138] sm:$0xff]
      %v278 = vld [vmem:[%s1 + $0x140] sm:$0xff]
      %v279 = vld [vmem:[%s1 + $0x148] sm:$0xff]
      %v280 = vld [vmem:[%s1 + $0x150] sm:$0xff]
      %v281 = vld [vmem:[%s1 + $0x158] sm:$0xff]
      %v282 = vld [vmem:[%s1 + $0x160] sm:$0xff]
      %v283 = vld [vmem:[%s1 + $0x168] sm:$0xff]
      %v284 = vld [vmem:[%s1 + $0x170] sm:$0xff]
      %v285 = vld [vmem:[%s1 + $0x178] sm:$0xff]
      %v286 = vld [vmem:[%s1 + $0x180] sm:$0xff]
      %v287 = vld [vmem:[%s1 + $0x188] sm:$0xff]
      %v288 = vld [vmem:[%s1 + $0x190] sm:$0xff]
      %v289 = vld [vmem:[%s1 + $0x198] sm:$0xff]
      %v290 = vld [vmem:[%s1 + $0x1a0] sm:$0xff]
      %v291 = vld [vmem:[%s1 + $0x1a8] sm:$0xff]
      %v292 = vld [vmem:[%s1 + $0x1b0] sm:$0xff]
      %v293 = vld [vmem:[%s1 + $0x1b8] sm:$0xff]
      %v294 = vld [vmem:[%s1 + $0x1c0] sm:$0xff]
      %v295 = vld [vmem:[%s1 + $0x1c8] sm:$0xff]
      %v296 = vld [vmem:[%s1 + $0x1d0] sm:$0xff]
      %v297 = vld [vmem:[%s1 + $0x1d8] sm:$0xff]
      %v298 = vld [vmem:[%s1 + $0x1e0] sm:$0xff]
      %v299 = vld [vmem:[%s1 + $0x1e8] sm:$0xff]
      %v300 = vld [vmem:[%s1 + $0x1f0] sm:$0xff]
      %v301 = vld [vmem:[%s1 + $0x1f8] sm:$0xff]
      %302 = vmatpush.msra.mxu0 %v268
      %303 = vmatpush.msra.mxu0 %v266
      %304 = vmatpush.msra.mxu0 %v264
      %305 = vmatpush.msra.mxu0 %v262
      %306 = vmatpush.msra.mxu0 %v260
      %307 = vmatpush.msra.mxu0 %v258
      %308 = vmatpush.msra.mxu0 %v256
      %309 = vmatpush.msra.mxu0 %v254
      %310 = vmatpush.msra.mxu0 %v252
      %311 = vmatpush.msra.mxu0 %v250
      %312 = vmatpush.msra.mxu0 %v248
      %313 = vmatpush.msra.mxu0 %v246
      %314 = vmatpush.msra.mxu0 %v244
      %315 = vmatpush.msra.mxu0 %v242
      %316 = vmatpush.msra.mxu0 %v240
      %317 = vmatpush.msra.mxu0 %v238
      %318 = vmatmul.f32.gmra.mxu0 %v234
      %v319 = vpop.f32.mrf.mxu0
      %v320 = vadd.f32 0.0, %v319
      %321 = vmatmul.f32.gmra.mxu0 %v236
      %v322 = vpop.f32.mrf.mxu0
      %v323 = vadd.f32 0.0, %v322
      %324 = vdwg.mxu0
      %325 = vmatpush.msra.mxu0 %v300
      %326 = vmatpush.msra.mxu0 %v298
      %327 = vmatpush.msra.mxu0 %v296
      %328 = vmatpush.msra.mxu0 %v294
      %329 = vmatpush.msra.mxu0 %v292
      %330 = vmatpush.msra.mxu0 %v290
      %331 = vmatpush.msra.mxu0 %v288
      %332 = vmatpush.msra.mxu0 %v286
      %333 = vmatpush.msra.mxu0 %v284
      %334 = vmatpush.msra.mxu0 %v282
      %335 = vmatpush.msra.mxu0 %v280
      %336 = vmatpush.msra.mxu0 %v278
      %337 = vmatpush.msra.mxu0 %v276
      %338 = vmatpush.msra.mxu0 %v274
      %339 = vmatpush.msra.mxu0 %v272
      %340 = vmatpush.msra.mxu0 %v270
      %341 = vmatmul.f32.gmra.mxu0 %v235
      %v342 = vpop.f32.mrf.mxu0
      %v343 = vadd.f32 %v320, %v342
      %344 = vmatmul.f32.gmra.mxu0 %v237
      %v345 = vpop.f32.mrf.mxu0
      %v346 = vadd.f32 %v323, %v345
      %347 = vdwg.mxu0
      %348 = vmatpush.msra.mxu0 %v269
      %349 = vmatpush.msra.mxu0 %v267
      %350 = vmatpush.msra.mxu0 %v265
      %351 = vmatpush.msra.mxu0 %v263
      %352 = vmatpush.msra.mxu0 %v261
      %353 = vmatpush.msra.mxu0 %v259
      %354 = vmatpush.msra.mxu0 %v257
      %355 = vmatpush.msra.mxu0 %v255
      %356 = vmatpush.msra.mxu0 %v253
      %357 = vmatpush.msra.mxu0 %v251
      %358 = vmatpush.msra.mxu0 %v249
      %359 = vmatpush.msra.mxu0 %v247
      %360 = vmatpush.msra.mxu0 %v245
      %361 = vmatpush.msra.mxu0 %v243
      %362 = vmatpush.msra.mxu0 %v241
      %363 = vmatpush.msra.mxu0 %v239
      %364 = vmatmul.f32.gmra.mxu0 %v234
      %v365 = vpop.f32.mrf.mxu0
      %v366 = vadd.f32 0.0, %v365
      %367 = vmatmul.f32.gmra.mxu0 %v236
      %v368 = vpop.f32.mrf.mxu0
      %v369 = vadd.f32 0.0, %v368
      %370 = vdwg.mxu0
      %371 = vmatpush.msra.mxu0 %v301
      %372 = vmatpush.msra.mxu0 %v299
      %373 = vmatpush.msra.mxu0 %v297
      %374 = vmatpush.msra.mxu0 %v295
      %375 = vmatpush.msra.mxu0 %v293
      %376 = vmatpush.msra.mxu0 %v291
      %377 = vmatpush.msra.mxu0 %v289
      %378 = vmatpush.msra.mxu0 %v287
      %379 = vmatpush.msra.mxu0 %v285
      %380 = vmatpush.msra.mxu0 %v283
      %381 = vmatpush.msra.mxu0 %v281
      %382 = vmatpush.msra.mxu0 %v279
      %383 = vmatpush.msra.mxu0 %v277
      %384 = vmatpush.msra.mxu0 %v275
      %385 = vmatpush.msra.mxu0 %v273
      %386 = vmatpush.msra.mxu0 %v271
      %387 = vmatmul.f32.gmra.mxu0 %v235
      %v388 = vpop.f32.mrf.mxu0
      %v389 = vadd.f32 %v366, %v388
      %390 = vmatmul.f32.gmra.mxu0 %v237
      %v391 = vpop.f32.mrf.mxu0
      %v392 = vadd.f32 %v369, %v391
      %393 = vdwg.mxu0
      %394 = vst [vmem:[%s170] sm:$0xff] %v343
      %395 = vst [vmem:[%s170 + $0x8] sm:$0xff] %v389
      %396 = vst [vmem:[%s170 + $0x10] sm:$0xff] %v346
      %397 = vst [vmem:[%s170 + $0x18] sm:$0xff] %v392
      %p398 = scmp.lt.s32.totalorder %s14, 1
      %s399 = scalar_select %p398, %s14, 1
      %s400 = smul.addr %s399, 4
      %s401 = smul.addr %s400, 8
      %s402 = scalar_lea.vmem %s3, %s401
      // Predicated region
      $region33: #{_roi_conv3d_box.1} parent=31 // pred_check
        %p403 = pneg %p100
      $region34: #{_roi_conv3d_box.1} parent=31 // pred_check_branch
        %405 = sbr.rel (%p403) target = $region36
      $region35: #{_roi_conv3d_box.1} parent=31 // pred_region
        _
      $region36: #{_roi_conv3d_box.1} parent=31 // pred_fallthru
        _
    $region32: #{_roi_conv3d_box.1} parent=5 // pred_fallthru
      _
    %p406 = scmp.le.s32.totalorder 2, %s9
    // Predicated region
    $region37: #{_roi_conv3d_box.1} parent=5 // pred_check
      %p407 = pneg %p406
    $region38: #{_roi_conv3d_box.1} parent=5 // pred_check_branch
      %409 = sbr.rel (%p407) target = $region40
    $region39: #{_roi_conv3d_box.1} parent=5 // pred_region
      %s410 = ssub.s32 %s9, 2
      // Predicated region
      $region41: #{_roi_conv3d_box.1} parent=39 // pred_check
        %p411 = pneg %p106
      $region42: #{_roi_conv3d_box.1} parent=39 // pred_check_branch
        %413 = sbr.rel (%p411) target = $region44
      $region43: #{_roi_conv3d_box.1} parent=39 // pred_region
        %p414 = scmp.lt.s32.totalorder %s15, 1
        %s415 = scalar_select %p414, %s15, 1
        %s416 = smul.addr %s415, 4
        %s417 = smul.addr %s416, 8
        %s418 = scalar_lea.vmem %s3, %s417
      $region44: #{_roi_conv3d_box.1} parent=39 // pred_fallthru
        _
    $region40: #{_roi_conv3d_box.1} parent=5 // pred_fallthru
      _
  $region6: #{_roi_conv3d_box.1} parent=0 // loop_footer
    %s13 = sadd.s32 1, %s9
  $region7: #{_roi_conv3d_box.1} parent=0 // loop_footer_branch
    %8 = sbr.rel target = $region3
  $region8: #{_roi_conv3d_box.1} parent=0 // loop_exit
    _

</llo_original>
